<compile_context>
chip_gen: v7x
topology: tpu7x:2x2x1
jax: 0.10.0
libtpu: 0.0.40
codegen_flags: <defaults>
</compile_context>

<pallas_src>
import jax
import jax.numpy as jnp
from jax import lax
from jax.experimental import pallas as pl
from jax.experimental.pallas import tpu as pltpu

_LANES = 128   # vreg lane width
_CHUNK = 16    # sublane rows per inner-loop step (2 vregs per f32 channel slab)


def _vmem_budget():
    """Generation-aware (max pixel-tile rows, scoped-VMEM limit)."""
    try:
        info = pltpu.get_tpu_info()
        cap = int(getattr(info, "vmem_capacity_bytes", 64 * 1024 * 1024))
    except Exception:
        cap = 64 * 1024 * 1024          # conservative: safe on v5e/v6e/v7x
    if cap >= 96 * 1024 * 1024:         # v5e / v6e: 128 MiB physical VMEM
        return 1024, 64 * 1024 * 1024
    return 512, 32 * 1024 * 1024        # v7x: 64 MiB physical VMEM


def _attention_kernel(wg_ref, wx_ref, wpsi_ref, bias_ref, g_ref, x_ref, o_ref):
    """g_ref: (f_g, TR, 128); x_ref / o_ref: (f_l, TR, 128) VMEM blocks.
    wg_ref: (f_int, f_g), wx_ref: (f_int, f_l), wpsi_ref: (f_int,) in SMEM
    (BN folded).  bias_ref: (f_int+1, _CHUNK, 128) VMEM -- rows 0..f_int-1
    hold b_g+b_x per intermediate channel, row f_int holds b_psi."""
    f_int, f_g = wg_ref.shape
    f_l = wx_ref.shape[1]
    tr = x_ref.shape[1]

    # Loop-invariant scalar weights (SMEM -> scalar regs).  Expected to lower
    # to vector*scalar VPU forms; if a bundle dump ever shows per-multiply
    # splats, switch to the MXU layout (see TODO at top of file).
    wg = [[wg_ref[ci, j] for j in range(f_g)] for ci in range(f_int)]
    wx = [[wx_ref[ci, j] for j in range(f_l)] for ci in range(f_int)]
    wpsi = [wpsi_ref[ci] for ci in range(f_int)]

    def process(r0, rows):
        sl = pl.ds(r0, rows)
        # Accumulator init from pre-splatted bias tiles (vld, not VALU splat).
        s = [bias_ref[ci, :rows, :] for ci in range(f_int)]
        # j-outer streaming: only one input channel slab live at a time.
        for j in range(f_g):
            gj = g_ref[j, sl, :].astype(jnp.float32)
            for ci in range(f_int):
                s[ci] = s[ci] + wg[ci][j] * gj          # folded Conv1x1_g+BN_g
        for j in range(f_l):
            xj = x_ref[j, sl, :].astype(jnp.float32)
            for ci in range(f_int):
                s[ci] = s[ci] + wx[ci][j] * xj          # folded Conv1x1_x+BN_x
        psi = bias_ref[f_int, :rows, :]
        for ci in range(f_int):
            psi = psi + wpsi[ci] * jnp.maximum(s[ci], 0.0)   # ReLU, psi conv
        # exp rides the EUP slot; one exact f32 divide/pixel keeps parity.
        # TODO(synk): pl.reciprocal(..., approx=True) would shave the divide
        # at the cost of exact 1e-5 parity with the PyTorch reference.
        psi = 1.0 / (1.0 + jnp.exp(-psi))
        # Re-load x channels for the gating multiply (vld slots have slack)
        # instead of holding them live across the f_int loops above.
        for j in range(f_l):
            xj = x_ref[j, sl, :].astype(jnp.float32)
            o_ref[j, sl, :] = (xj * psi).astype(o_ref.dtype)

    n_full = tr // _CHUNK
    tail = tr - n_full * _CHUNK
    if n_full > 0:
        def body(i, carry):
            process(pl.multiple_of(i * _CHUNK, _CHUNK), _CHUNK)
            return carry
        lax.fori_loop(0, n_full, body, 0, unroll=2)
    if tail > 0:
        process(n_full * _CHUNK, tail)


def attention_block_pallas(g4, x4, wg, wx, wpsi, bias_tiles, *, tr, vmem_limit):
    """g4: (N, f_g, R, 128), x4: (N, f_l, R, 128) with R % tr == 0."""
    n, f_g, r_tot, lanes = g4.shape
    _, f_l, _, _ = x4.shape
    f_int = wg.shape[0]
    grid = (n, r_tot // tr)

    pix_map = lambda i, j: (i, 0, j, 0)
    smem = pl.BlockSpec(memory_space=pltpu.MemorySpace.SMEM)

    n_pix = n * r_tot * lanes
    cost = pl.CostEstimate(
        flops=n_pix * (2 * f_int * (f_g + f_l + 1) + 2 * f_l),
        transcendentals=n_pix,
        bytes_accessed=n_pix * (f_g + 2 * f_l) * int(x4.dtype.itemsize),
    )

    return pl.pallas_call(
        _attention_kernel,
        out_shape=jax.ShapeDtypeStruct((n, f_l, r_tot, lanes), x4.dtype),
        grid_spec=pltpu.PrefetchScalarGridSpec(
            num_scalar_prefetch=0,
            grid=grid,
            in_specs=[
                smem, smem, smem,                                   # wg, wx, wpsi
                pl.BlockSpec((f_int + 1, _CHUNK, lanes),
                             lambda i, j: (0, 0, 0)),               # bias tiles
                # TODO(synk): pipeline_mode=pl.Buffered(3) on g/x would hide
                # DMA jitter on HBM-bound v5e.
                pl.BlockSpec((None, f_g, tr, lanes), pix_map),      # g block
                pl.BlockSpec((None, f_l, tr, lanes), pix_map),      # x block
            ],
            out_specs=pl.BlockSpec((None, f_l, tr, lanes), pix_map),
        ),
        compiler_params=pltpu.CompilerParams(
            dimension_semantics=("parallel", "parallel"),
            vmem_limit_bytes=vmem_limit,
        ),
        cost_estimate=cost,
    )(wg, wx, wpsi, bias_tiles, g4, x4)


def fold_bn(conv_w, conv_b, gamma, beta, mean, var, eps=1e-5):
    """Fold eval-mode BatchNorm into a 1x1 conv. conv_w: (C_out, C_in)."""
    scale = gamma / jnp.sqrt(var + eps)                    # (C_out,)
    w_folded = conv_w * scale[:, None]                     # (C_out, C_in)
    b_folded = scale * (conv_b - mean) + beta              # (C_out,)
    return w_folded.astype(jnp.float32), b_folded.astype(jnp.float32)


def attention_block(g_nchw, x_nchw, params):
    """Matches the PyTorch forward. g, x in NCHW; output NCHW."""
    n, f_g, h, w = g_nchw.shape
    _, f_l, _, _ = x_nchw.shape

    wg, bg = fold_bn(params["wg"], params["bg"], params["gamma_g"],
                     params["beta_g"], params["mean_g"], params["var_g"])
    wx, bx = fold_bn(params["wx"], params["bx"], params["gamma_x"],
                     params["beta_x"], params["mean_x"], params["var_x"])
    b = bg + bx                                            # (f_int,)
    wpsi = params["wpsi"].reshape(-1).astype(jnp.float32)  # (f_int,)
    bpsi = params["bpsi"].reshape(-1).astype(jnp.float32)  # (1,)
    f_int = wg.shape[0]

    # Pre-splatted bias tiles (tiny): kernel initialises accumulators from
    # these via vld instead of per-chunk VALU broadcasts.
    bias_tiles = jnp.broadcast_to(
        jnp.concatenate([b, bpsi])[:, None, None],
        (f_int + 1, _CHUNK, _LANES)).astype(jnp.float32)

    max_tr, vmem_limit = _vmem_budget()

    # Free reshapes (no transposes): NCHW -> (N, C, P) -> (N, C, R, 128).
    p = h * w
    r = pl.cdiv(p, _LANES)
    grid_r = pl.cdiv(r, max_tr)
    # v7x megacore: ensure >= 2 "parallel" grid steps so both TensorCores get
    # work even for batch-1 inputs that fit one block (no-op on v5e/v6e).
    if n * grid_r < 2 and r >= 16:
        grid_r = 2
    tr = pl.cdiv(r, grid_r)
    if grid_r > 1:
        tr = pl.cdiv(tr, 8) * 8       # tiled blocks need sublane-multiple rows
    r_pad = grid_r * tr
    p_pad = r_pad * _LANES

    g3 = g_nchw.reshape(n, f_g, p)
    x3 = x_nchw.reshape(n, f_l, p)
    if p_pad != p:
        # TODO(synk): for odd H*W this pad + trailing slice re-reads/re-writes
        # g/x/out in HBM; mask the last lane-row inside the kernel (or keep the
        # padded layout across neighboring ops) to eliminate that traffic.
        padding = ((0, 0), (0, 0), (0, p_pad - p))
        g3 = jnp.pad(g3, padding)
        x3 = jnp.pad(x3, padding)
    g4 = g3.reshape(n, f_g, r_pad, _LANES)
    x4 = x3.reshape(n, f_l, r_pad, _LANES)

    out4 = attention_block_pallas(g4, x4, wg, wx, wpsi, bias_tiles,
                                  tr=tr, vmem_limit=vmem_limit)

    out = out4.reshape(n, f_l, p_pad)
    if p_pad != p:
        out = out[:, :, :p]
    return out.reshape(n, f_l, h, w)


def _reference(g_nchw, x_nchw, params, eps=1e-5):
    """Pure-JAX reference (eval-mode BN) for correctness checking."""
    def conv1x1(z, w, b):  # z NCHW, w (C_out, C_in), b (C_out,)
        return jnp.einsum("nchw,oc->nohw", z, w) + b[None, :, None, None]

    def bn(z, gamma, beta, mean, var):
        s = gamma / jnp.sqrt(var + eps)
        return z * s[None, :, None, None] + (beta - mean * s)[None, :, None, None]

    gp = bn(conv1x1(g_nchw, params["wg"], params["bg"]),
            params["gamma_g"], params["beta_g"], params["mean_g"], params["var_g"])
    xp = bn(conv1x1(x_nchw, params["wx"], params["bx"]),
            params["gamma_x"], params["beta_x"], params["mean_x"], params["var_x"])
    s = jax.nn.relu(gp + xp)
    psi = jax.nn.sigmoid(conv1x1(s, params["wpsi"], params["bpsi"]))
    return x_nchw * psi


def _make_params(key, f_g, f_l, f_int):
    ks = jax.random.split(key, 14)
    def rnd(k, shape, s=0.3):
        return s * jax.random.normal(k, shape, jnp.float32)
    return {
        "wg": rnd(ks[0], (f_int, f_g)),
        "bg": rnd(ks[1], (f_int,), 0.1),
        "gamma_g": 1.0 + rnd(ks[2], (f_int,), 0.1),
        "beta_g": rnd(ks[3], (f_int,), 0.1),
        "mean_g": rnd(ks[4], (f_int,), 0.05),
        "var_g": 1.0 + 0.1 * jnp.abs(jax.random.normal(ks[5], (f_int,), jnp.float32)),
        "wx": rnd(ks[6], (f_int, f_l)),
        "bx": rnd(ks[7], (f_int,), 0.1),
        "gamma_x": 1.0 + rnd(ks[8], (f_int,), 0.1),
        "beta_x": rnd(ks[9], (f_int,), 0.1),
        "mean_x": rnd(ks[10], (f_int,), 0.05),
        "var_x": 1.0 + 0.1 * jnp.abs(jax.random.normal(ks[11], (f_int,), jnp.float32)),
        "wpsi": rnd(ks[12], (1, f_int)),
        "bpsi": rnd(ks[13], (1,), 0.1),
    }


if __name__ == "__main__":
    key = jax.random.PRNGKey(0)
    k1, k2, kp1, kp2 = jax.random.split(key, 4)

    # Case 1: typical shapes (pixel count lane-aligned, no padding path).
    n_b, h, w = 2, 16, 16
    f_g, f_l, f_int = 6, 4, 8
    g = jax.random.normal(k1, (n_b, f_g, h, w), jnp.float32)
    x = jax.random.normal(k2, (n_b, f_l, h, w), jnp.float32)
    params = _make_params(kp1, f_g, f_l, f_int)
    out = jax.block_until_ready(attention_block(g, x, params))
    ref = jax.block_until_ready(_reference(g, x, params))
    assert out.shape == x.shape and out.dtype == x.dtype
    assert jnp.allclose(out, ref, atol=1e-5, rtol=1e-5), "case 1 mismatch"

    # Case 2: odd spatial size / channels (exercises lane padding + tail path).
    n2, h2, w2 = 1, 9, 11
    f_g2, f_l2, f_int2 = 3, 5, 7
    kg, kx = jax.random.split(k1)
    g2 = jax.random.normal(kg, (n2, f_g2, h2, w2), jnp.float32)
    x2 = jax.random.normal(kx, (n2, f_l2, h2, w2), jnp.float32)
    params2 = _make_params(kp2, f_g2, f_l2, f_int2)
    out2 = jax.block_until_ready(attention_block(g2, x2, params2))
    ref2 = jax.block_until_ready(_reference(g2, x2, params2))
    assert out2.shape == x2.shape
    assert jnp.allclose(out2, ref2, atol=1e-5, rtol=1e-5), "case 2 mismatch"

    print("KERNEL_OK")
</pallas_src>

<mosaic_0001>
module attributes {stable_mosaic.version = 11 : i64} {
  func.func @_attention_kernel(%arg0: i32, %arg1: i32, %arg2: memref<8x6xf32, #tpu.memory_space<smem>>, %arg3: memref<8x4xf32, #tpu.memory_space<smem>>, %arg4: memref<8xf32, #tpu.memory_space<smem>>, %arg5: memref<9x16x128xf32, #tpu.memory_space<vmem>>, %arg6: memref<1x6x2x128xf32, #tpu.memory_space<vmem>>, %arg7: memref<1x4x2x128xf32, #tpu.memory_space<vmem>>, %arg8: memref<1x4x2x128xf32, #tpu.memory_space<vmem>>) attributes {dimension_semantics = [#tpu.dimension_semantics<parallel>, #tpu.dimension_semantics<parallel>], iteration_bounds = array<i64: 2, 1>, scalar_prefetch = 0 : i64, scratch_operands = 0 : i64, tpu.core_type = #tpu.core_type<tc>, window_params = [{transform_indices = @transform_0, window_bounds = array<i64: 8, 6>}, {transform_indices = @transform_1, window_bounds = array<i64: 8, 4>}, {transform_indices = @transform_2, window_bounds = array<i64: 8>}, {pipeline_mode = #tpu.pipeline_mode<synchronous>, transform_indices = @transform_3, window_bounds = array<i64: 9, 16, 128>}, {transform_indices = @transform_4, window_bounds = array<i64: 1, 6, 2, 128>}, {transform_indices = @transform_5, window_bounds = array<i64: 1, 4, 2, 128>}, {transform_indices = @transform_6, window_bounds = array<i64: 1, 4, 2, 128>}]} {
    %c0 = arith.constant 0 : index
    %c0_0 = arith.constant 0 : index
    %0 = memref.load %arg2[%c0, %c0_0] : memref<8x6xf32, #tpu.memory_space<smem>>
    %c0_1 = arith.constant 0 : index
    %c1 = arith.constant 1 : index
    %1 = memref.load %arg2[%c0_1, %c1] : memref<8x6xf32, #tpu.memory_space<smem>>
    %c0_2 = arith.constant 0 : index
    %c2 = arith.constant 2 : index
    %2 = memref.load %arg2[%c0_2, %c2] : memref<8x6xf32, #tpu.memory_space<smem>>
    %c0_3 = arith.constant 0 : index
    %c3 = arith.constant 3 : index
    %3 = memref.load %arg2[%c0_3, %c3] : memref<8x6xf32, #tpu.memory_space<smem>>
    %c0_4 = arith.constant 0 : index
    %c4 = arith.constant 4 : index
    %4 = memref.load %arg2[%c0_4, %c4] : memref<8x6xf32, #tpu.memory_space<smem>>
    %c0_5 = arith.constant 0 : index
    %c5 = arith.constant 5 : index
    %5 = memref.load %arg2[%c0_5, %c5] : memref<8x6xf32, #tpu.memory_space<smem>>
    %c1_6 = arith.constant 1 : index
    %c0_7 = arith.constant 0 : index
    %6 = memref.load %arg2[%c1_6, %c0_7] : memref<8x6xf32, #tpu.memory_space<smem>>
    %c1_8 = arith.constant 1 : index
    %c1_9 = arith.constant 1 : index
    %7 = memref.load %arg2[%c1_8, %c1_9] : memref<8x6xf32, #tpu.memory_space<smem>>
    %c1_10 = arith.constant 1 : index
    %c2_11 = arith.constant 2 : index
    %8 = memref.load %arg2[%c1_10, %c2_11] : memref<8x6xf32, #tpu.memory_space<smem>>
    %c1_12 = arith.constant 1 : index
    %c3_13 = arith.constant 3 : index
    %9 = memref.load %arg2[%c1_12, %c3_13] : memref<8x6xf32, #tpu.memory_space<smem>>
    %c1_14 = arith.constant 1 : index
    %c4_15 = arith.constant 4 : index
    %10 = memref.load %arg2[%c1_14, %c4_15] : memref<8x6xf32, #tpu.memory_space<smem>>
    %c1_16 = arith.constant 1 : index
    %c5_17 = arith.constant 5 : index
    %11 = memref.load %arg2[%c1_16, %c5_17] : memref<8x6xf32, #tpu.memory_space<smem>>
    %c2_18 = arith.constant 2 : index
    %c0_19 = arith.constant 0 : index
    %12 = memref.load %arg2[%c2_18, %c0_19] : memref<8x6xf32, #tpu.memory_space<smem>>
    %c2_20 = arith.constant 2 : index
    %c1_21 = arith.constant 1 : index
    %13 = memref.load %arg2[%c2_20, %c1_21] : memref<8x6xf32, #tpu.memory_space<smem>>
    %c2_22 = arith.constant 2 : index
    %c2_23 = arith.constant 2 : index
    %14 = memref.load %arg2[%c2_22, %c2_23] : memref<8x6xf32, #tpu.memory_space<smem>>
    %c2_24 = arith.constant 2 : index
    %c3_25 = arith.constant 3 : index
    %15 = memref.load %arg2[%c2_24, %c3_25] : memref<8x6xf32, #tpu.memory_space<smem>>
    %c2_26 = arith.constant 2 : index
    %c4_27 = arith.constant 4 : index
    %16 = memref.load %arg2[%c2_26, %c4_27] : memref<8x6xf32, #tpu.memory_space<smem>>
    %c2_28 = arith.constant 2 : index
    %c5_29 = arith.constant 5 : index
    %17 = memref.load %arg2[%c2_28, %c5_29] : memref<8x6xf32, #tpu.memory_space<smem>>
    %c3_30 = arith.constant 3 : index
    %c0_31 = arith.constant 0 : index
    %18 = memref.load %arg2[%c3_30, %c0_31] : memref<8x6xf32, #tpu.memory_space<smem>>
    %c3_32 = arith.constant 3 : index
    %c1_33 = arith.constant 1 : index
    %19 = memref.load %arg2[%c3_32, %c1_33] : memref<8x6xf32, #tpu.memory_space<smem>>
    %c3_34 = arith.constant 3 : index
    %c2_35 = arith.constant 2 : index
    %20 = memref.load %arg2[%c3_34, %c2_35] : memref<8x6xf32, #tpu.memory_space<smem>>
    %c3_36 = arith.constant 3 : index
    %c3_37 = arith.constant 3 : index
    %21 = memref.load %arg2[%c3_36, %c3_37] : memref<8x6xf32, #tpu.memory_space<smem>>
    %c3_38 = arith.constant 3 : index
    %c4_39 = arith.constant 4 : index
    %22 = memref.load %arg2[%c3_38, %c4_39] : memref<8x6xf32, #tpu.memory_space<smem>>
    %c3_40 = arith.constant 3 : index
    %c5_41 = arith.constant 5 : index
    %23 = memref.load %arg2[%c3_40, %c5_41] : memref<8x6xf32, #tpu.memory_space<smem>>
    %c4_42 = arith.constant 4 : index
    %c0_43 = arith.constant 0 : index
    %24 = memref.load %arg2[%c4_42, %c0_43] : memref<8x6xf32, #tpu.memory_space<smem>>
    %c4_44 = arith.constant 4 : index
    %c1_45 = arith.constant 1 : index
    %25 = memref.load %arg2[%c4_44, %c1_45] : memref<8x6xf32, #tpu.memory_space<smem>>
    %c4_46 = arith.constant 4 : index
    %c2_47 = arith.constant 2 : index
    %26 = memref.load %arg2[%c4_46, %c2_47] : memref<8x6xf32, #tpu.memory_space<smem>>
    %c4_48 = arith.constant 4 : index
    %c3_49 = arith.constant 3 : index
    %27 = memref.load %arg2[%c4_48, %c3_49] : memref<8x6xf32, #tpu.memory_space<smem>>
    %c4_50 = arith.constant 4 : index
    %c4_51 = arith.constant 4 : index
    %28 = memref.load %arg2[%c4_50, %c4_51] : memref<8x6xf32, #tpu.memory_space<smem>>
    %c4_52 = arith.constant 4 : index
    %c5_53 = arith.constant 5 : index
    %29 = memref.load %arg2[%c4_52, %c5_53] : memref<8x6xf32, #tpu.memory_space<smem>>
    %c5_54 = arith.constant 5 : index
    %c0_55 = arith.constant 0 : index
    %30 = memref.load %arg2[%c5_54, %c0_55] : memref<8x6xf32, #tpu.memory_space<smem>>
    %c5_56 = arith.constant 5 : index
    %c1_57 = arith.constant 1 : index
    %31 = memref.load %arg2[%c5_56, %c1_57] : memref<8x6xf32, #tpu.memory_space<smem>>
    %c5_58 = arith.constant 5 : index
    %c2_59 = arith.constant 2 : index
    %32 = memref.load %arg2[%c5_58, %c2_59] : memref<8x6xf32, #tpu.memory_space<smem>>
    %c5_60 = arith.constant 5 : index
    %c3_61 = arith.constant 3 : index
    %33 = memref.load %arg2[%c5_60, %c3_61] : memref<8x6xf32, #tpu.memory_space<smem>>
    %c5_62 = arith.constant 5 : index
    %c4_63 = arith.constant 4 : index
    %34 = memref.load %arg2[%c5_62, %c4_63] : memref<8x6xf32, #tpu.memory_space<smem>>
    %c5_64 = arith.constant 5 : index
    %c5_65 = arith.constant 5 : index
    %35 = memref.load %arg2[%c5_64, %c5_65] : memref<8x6xf32, #tpu.memory_space<smem>>
    %c6 = arith.constant 6 : index
    %c0_66 = arith.constant 0 : index
    %36 = memref.load %arg2[%c6, %c0_66] : memref<8x6xf32, #tpu.memory_space<smem>>
    %c6_67 = arith.constant 6 : index
    %c1_68 = arith.constant 1 : index
    %37 = memref.load %arg2[%c6_67, %c1_68] : memref<8x6xf32, #tpu.memory_space<smem>>
    %c6_69 = arith.constant 6 : index
    %c2_70 = arith.constant 2 : index
    %38 = memref.load %arg2[%c6_69, %c2_70] : memref<8x6xf32, #tpu.memory_space<smem>>
    %c6_71 = arith.constant 6 : index
    %c3_72 = arith.constant 3 : index
    %39 = memref.load %arg2[%c6_71, %c3_72] : memref<8x6xf32, #tpu.memory_space<smem>>
    %c6_73 = arith.constant 6 : index
    %c4_74 = arith.constant 4 : index
    %40 = memref.load %arg2[%c6_73, %c4_74] : memref<8x6xf32, #tpu.memory_space<smem>>
    %c6_75 = arith.constant 6 : index
    %c5_76 = arith.constant 5 : index
    %41 = memref.load %arg2[%c6_75, %c5_76] : memref<8x6xf32, #tpu.memory_space<smem>>
    %c7 = arith.constant 7 : index
    %c0_77 = arith.constant 0 : index
    %42 = memref.load %arg2[%c7, %c0_77] : memref<8x6xf32, #tpu.memory_space<smem>>
    %c7_78 = arith.constant 7 : index
    %c1_79 = arith.constant 1 : index
    %43 = memref.load %arg2[%c7_78, %c1_79] : memref<8x6xf32, #tpu.memory_space<smem>>
    %c7_80 = arith.constant 7 : index
    %c2_81 = arith.constant 2 : index
    %44 = memref.load %arg2[%c7_80, %c2_81] : memref<8x6xf32, #tpu.memory_space<smem>>
    %c7_82 = arith.constant 7 : index
    %c3_83 = arith.constant 3 : index
    %45 = memref.load %arg2[%c7_82, %c3_83] : memref<8x6xf32, #tpu.memory_space<smem>>
    %c7_84 = arith.constant 7 : index
    %c4_85 = arith.constant 4 : index
    %46 = memref.load %arg2[%c7_84, %c4_85] : memref<8x6xf32, #tpu.memory_space<smem>>
    %c7_86 = arith.constant 7 : index
    %c5_87 = arith.constant 5 : index
    %47 = memref.load %arg2[%c7_86, %c5_87] : memref<8x6xf32, #tpu.memory_space<smem>>
    %c0_88 = arith.constant 0 : index
    %c0_89 = arith.constant 0 : index
    %48 = memref.load %arg3[%c0_88, %c0_89] : memref<8x4xf32, #tpu.memory_space<smem>>
    %c0_90 = arith.constant 0 : index
    %c1_91 = arith.constant 1 : index
    %49 = memref.load %arg3[%c0_90, %c1_91] : memref<8x4xf32, #tpu.memory_space<smem>>
    %c0_92 = arith.constant 0 : index
    %c2_93 = arith.constant 2 : index
    %50 = memref.load %arg3[%c0_92, %c2_93] : memref<8x4xf32, #tpu.memory_space<smem>>
    %c0_94 = arith.constant 0 : index
    %c3_95 = arith.constant 3 : index
    %51 = memref.load %arg3[%c0_94, %c3_95] : memref<8x4xf32, #tpu.memory_space<smem>>
    %c1_96 = arith.constant 1 : index
    %c0_97 = arith.constant 0 : index
    %52 = memref.load %arg3[%c1_96, %c0_97] : memref<8x4xf32, #tpu.memory_space<smem>>
    %c1_98 = arith.constant 1 : index
    %c1_99 = arith.constant 1 : index
    %53 = memref.load %arg3[%c1_98, %c1_99] : memref<8x4xf32, #tpu.memory_space<smem>>
    %c1_100 = arith.constant 1 : index
    %c2_101 = arith.constant 2 : index
    %54 = memref.load %arg3[%c1_100, %c2_101] : memref<8x4xf32, #tpu.memory_space<smem>>
    %c1_102 = arith.constant 1 : index
    %c3_103 = arith.constant 3 : index
    %55 = memref.load %arg3[%c1_102, %c3_103] : memref<8x4xf32, #tpu.memory_space<smem>>
    %c2_104 = arith.constant 2 : index
    %c0_105 = arith.constant 0 : index
    %56 = memref.load %arg3[%c2_104, %c0_105] : memref<8x4xf32, #tpu.memory_space<smem>>
    %c2_106 = arith.constant 2 : index
    %c1_107 = arith.constant 1 : index
    %57 = memref.load %arg3[%c2_106, %c1_107] : memref<8x4xf32, #tpu.memory_space<smem>>
    %c2_108 = arith.constant 2 : index
    %c2_109 = arith.constant 2 : index
    %58 = memref.load %arg3[%c2_108, %c2_109] : memref<8x4xf32, #tpu.memory_space<smem>>
    %c2_110 = arith.constant 2 : index
    %c3_111 = arith.constant 3 : index
    %59 = memref.load %arg3[%c2_110, %c3_111] : memref<8x4xf32, #tpu.memory_space<smem>>
    %c3_112 = arith.constant 3 : index
    %c0_113 = arith.constant 0 : index
    %60 = memref.load %arg3[%c3_112, %c0_113] : memref<8x4xf32, #tpu.memory_space<smem>>
    %c3_114 = arith.constant 3 : index
    %c1_115 = arith.constant 1 : index
    %61 = memref.load %arg3[%c3_114, %c1_115] : memref<8x4xf32, #tpu.memory_space<smem>>
    %c3_116 = arith.constant 3 : index
    %c2_117 = arith.constant 2 : index
    %62 = memref.load %arg3[%c3_116, %c2_117] : memref<8x4xf32, #tpu.memory_space<smem>>
    %c3_118 = arith.constant 3 : index
    %c3_119 = arith.constant 3 : index
    %63 = memref.load %arg3[%c3_118, %c3_119] : memref<8x4xf32, #tpu.memory_space<smem>>
    %c4_120 = arith.constant 4 : index
    %c0_121 = arith.constant 0 : index
    %64 = memref.load %arg3[%c4_120, %c0_121] : memref<8x4xf32, #tpu.memory_space<smem>>
    %c4_122 = arith.constant 4 : index
    %c1_123 = arith.constant 1 : index
    %65 = memref.load %arg3[%c4_122, %c1_123] : memref<8x4xf32, #tpu.memory_space<smem>>
    %c4_124 = arith.constant 4 : index
    %c2_125 = arith.constant 2 : index
    %66 = memref.load %arg3[%c4_124, %c2_125] : memref<8x4xf32, #tpu.memory_space<smem>>
    %c4_126 = arith.constant 4 : index
    %c3_127 = arith.constant 3 : index
    %67 = memref.load %arg3[%c4_126, %c3_127] : memref<8x4xf32, #tpu.memory_space<smem>>
    %c5_128 = arith.constant 5 : index
    %c0_129 = arith.constant 0 : index
    %68 = memref.load %arg3[%c5_128, %c0_129] : memref<8x4xf32, #tpu.memory_space<smem>>
    %c5_130 = arith.constant 5 : index
    %c1_131 = arith.constant 1 : index
    %69 = memref.load %arg3[%c5_130, %c1_131] : memref<8x4xf32, #tpu.memory_space<smem>>
    %c5_132 = arith.constant 5 : index
    %c2_133 = arith.constant 2 : index
    %70 = memref.load %arg3[%c5_132, %c2_133] : memref<8x4xf32, #tpu.memory_space<smem>>
    %c5_134 = arith.constant 5 : index
    %c3_135 = arith.constant 3 : index
    %71 = memref.load %arg3[%c5_134, %c3_135] : memref<8x4xf32, #tpu.memory_space<smem>>
    %c6_136 = arith.constant 6 : index
    %c0_137 = arith.constant 0 : index
    %72 = memref.load %arg3[%c6_136, %c0_137] : memref<8x4xf32, #tpu.memory_space<smem>>
    %c6_138 = arith.constant 6 : index
    %c1_139 = arith.constant 1 : index
    %73 = memref.load %arg3[%c6_138, %c1_139] : memref<8x4xf32, #tpu.memory_space<smem>>
    %c6_140 = arith.constant 6 : index
    %c2_141 = arith.constant 2 : index
    %74 = memref.load %arg3[%c6_140, %c2_141] : memref<8x4xf32, #tpu.memory_space<smem>>
    %c6_142 = arith.constant 6 : index
    %c3_143 = arith.constant 3 : index
    %75 = memref.load %arg3[%c6_142, %c3_143] : memref<8x4xf32, #tpu.memory_space<smem>>
    %c7_144 = arith.constant 7 : index
    %c0_145 = arith.constant 0 : index
    %76 = memref.load %arg3[%c7_144, %c0_145] : memref<8x4xf32, #tpu.memory_space<smem>>
    %c7_146 = arith.constant 7 : index
    %c1_147 = arith.constant 1 : index
    %77 = memref.load %arg3[%c7_146, %c1_147] : memref<8x4xf32, #tpu.memory_space<smem>>
    %c7_148 = arith.constant 7 : index
    %c2_149 = arith.constant 2 : index
    %78 = memref.load %arg3[%c7_148, %c2_149] : memref<8x4xf32, #tpu.memory_space<smem>>
    %c7_150 = arith.constant 7 : index
    %c3_151 = arith.constant 3 : index
    %79 = memref.load %arg3[%c7_150, %c3_151] : memref<8x4xf32, #tpu.memory_space<smem>>
    %c0_152 = arith.constant 0 : index
    %80 = memref.load %arg4[%c0_152] : memref<8xf32, #tpu.memory_space<smem>>
    %c1_153 = arith.constant 1 : index
    %81 = memref.load %arg4[%c1_153] : memref<8xf32, #tpu.memory_space<smem>>
    %c2_154 = arith.constant 2 : index
    %82 = memref.load %arg4[%c2_154] : memref<8xf32, #tpu.memory_space<smem>>
    %c3_155 = arith.constant 3 : index
    %83 = memref.load %arg4[%c3_155] : memref<8xf32, #tpu.memory_space<smem>>
    %c4_156 = arith.constant 4 : index
    %84 = memref.load %arg4[%c4_156] : memref<8xf32, #tpu.memory_space<smem>>
    %c5_157 = arith.constant 5 : index
    %85 = memref.load %arg4[%c5_157] : memref<8xf32, #tpu.memory_space<smem>>
    %c6_158 = arith.constant 6 : index
    %86 = memref.load %arg4[%c6_158] : memref<8xf32, #tpu.memory_space<smem>>
    %c7_159 = arith.constant 7 : index
    %87 = memref.load %arg4[%c7_159] : memref<8xf32, #tpu.memory_space<smem>>
    %c0_160 = arith.constant 0 : index
    %c0_161 = arith.constant 0 : index
    %c0_162 = arith.constant 0 : index
    %88 = vector.load %arg5[%c0_160, %c0_161, %c0_162] : memref<9x16x128xf32, #tpu.memory_space<vmem>>, vector<1x2x128xf32>
    %89 = vector.shape_cast %88 : vector<1x2x128xf32> to vector<2x128xf32>
    %c1_163 = arith.constant 1 : index
    %c0_164 = arith.constant 0 : index
    %c0_165 = arith.constant 0 : index
    %90 = vector.load %arg5[%c1_163, %c0_164, %c0_165] : memref<9x16x128xf32, #tpu.memory_space<vmem>>, vector<1x2x128xf32>
    %91 = vector.shape_cast %90 : vector<1x2x128xf32> to vector<2x128xf32>
    %c2_166 = arith.constant 2 : index
    %c0_167 = arith.constant 0 : index
    %c0_168 = arith.constant 0 : index
    %92 = vector.load %arg5[%c2_166, %c0_167, %c0_168] : memref<9x16x128xf32, #tpu.memory_space<vmem>>, vector<1x2x128xf32>
    %93 = vector.shape_cast %92 : vector<1x2x128xf32> to vector<2x128xf32>
    %c3_169 = arith.constant 3 : index
    %c0_170 = arith.constant 0 : index
    %c0_171 = arith.constant 0 : index
    %94 = vector.load %arg5[%c3_169, %c0_170, %c0_171] : memref<9x16x128xf32, #tpu.memory_space<vmem>>, vector<1x2x128xf32>
    %95 = vector.shape_cast %94 : vector<1x2x128xf32> to vector<2x128xf32>
    %c4_172 = arith.constant 4 : index
    %c0_173 = arith.constant 0 : index
    %c0_174 = arith.constant 0 : index
    %96 = vector.load %arg5[%c4_172, %c0_173, %c0_174] : memref<9x16x128xf32, #tpu.memory_space<vmem>>, vector<1x2x128xf32>
    %97 = vector.shape_cast %96 : vector<1x2x128xf32> to vector<2x128xf32>
    %c5_175 = arith.constant 5 : index
    %c0_176 = arith.constant 0 : index
    %c0_177 = arith.constant 0 : index
    %98 = vector.load %arg5[%c5_175, %c0_176, %c0_177] : memref<9x16x128xf32, #tpu.memory_space<vmem>>, vector<1x2x128xf32>
    %99 = vector.shape_cast %98 : vector<1x2x128xf32> to vector<2x128xf32>
    %c6_178 = arith.constant 6 : index
    %c0_179 = arith.constant 0 : index
    %c0_180 = arith.constant 0 : index
    %100 = vector.load %arg5[%c6_178, %c0_179, %c0_180] : memref<9x16x128xf32, #tpu.memory_space<vmem>>, vector<1x2x128xf32>
    %101 = vector.shape_cast %100 : vector<1x2x128xf32> to vector<2x128xf32>
    %c7_181 = arith.constant 7 : index
    %c0_182 = arith.constant 0 : index
    %c0_183 = arith.constant 0 : index
    %102 = vector.load %arg5[%c7_181, %c0_182, %c0_183] : memref<9x16x128xf32, #tpu.memory_space<vmem>>, vector<1x2x128xf32>
    %103 = vector.shape_cast %102 : vector<1x2x128xf32> to vector<2x128xf32>
    %c0_184 = arith.constant 0 : index
    %c0_185 = arith.constant 0 : index
    %c0_186 = arith.constant 0 : index
    %c0_187 = arith.constant 0 : index
    %104 = vector.load %arg6[%c0_184, %c0_185, %c0_186, %c0_187] : memref<1x6x2x128xf32, #tpu.memory_space<vmem>>, vector<1x1x2x128xf32>
    %105 = vector.shape_cast %104 : vector<1x1x2x128xf32> to vector<2x128xf32>
    %106 = vector.broadcast %0 : f32 to vector<2x128xf32>
    %107 = arith.mulf %106, %105 : vector<2x128xf32>
    %108 = arith.addf %89, %107 : vector<2x128xf32>
    %109 = vector.broadcast %6 : f32 to vector<2x128xf32>
    %110 = arith.mulf %109, %105 : vector<2x128xf32>
    %111 = arith.addf %91, %110 : vector<2x128xf32>
    %112 = vector.broadcast %12 : f32 to vector<2x128xf32>
    %113 = arith.mulf %112, %105 : vector<2x128xf32>
    %114 = arith.addf %93, %113 : vector<2x128xf32>
    %115 = vector.broadcast %18 : f32 to vector<2x128xf32>
    %116 = arith.mulf %115, %105 : vector<2x128xf32>
    %117 = arith.addf %95, %116 : vector<2x128xf32>
    %118 = vector.broadcast %24 : f32 to vector<2x128xf32>
    %119 = arith.mulf %118, %105 : vector<2x128xf32>
    %120 = arith.addf %97, %119 : vector<2x128xf32>
    %121 = vector.broadcast %30 : f32 to vector<2x128xf32>
    %122 = arith.mulf %121, %105 : vector<2x128xf32>
    %123 = arith.addf %99, %122 : vector<2x128xf32>
    %124 = vector.broadcast %36 : f32 to vector<2x128xf32>
    %125 = arith.mulf %124, %105 : vector<2x128xf32>
    %126 = arith.addf %101, %125 : vector<2x128xf32>
    %127 = vector.broadcast %42 : f32 to vector<2x128xf32>
    %128 = arith.mulf %127, %105 : vector<2x128xf32>
    %129 = arith.addf %103, %128 : vector<2x128xf32>
    %c0_188 = arith.constant 0 : index
    %c1_189 = arith.constant 1 : index
    %c0_190 = arith.constant 0 : index
    %c0_191 = arith.constant 0 : index
    %130 = vector.load %arg6[%c0_188, %c1_189, %c0_190, %c0_191] : memref<1x6x2x128xf32, #tpu.memory_space<vmem>>, vector<1x1x2x128xf32>
    %131 = vector.shape_cast %130 : vector<1x1x2x128xf32> to vector<2x128xf32>
    %132 = vector.broadcast %1 : f32 to vector<2x128xf32>
    %133 = arith.mulf %132, %131 : vector<2x128xf32>
    %134 = arith.addf %108, %133 : vector<2x128xf32>
    %135 = vector.broadcast %7 : f32 to vector<2x128xf32>
    %136 = arith.mulf %135, %131 : vector<2x128xf32>
    %137 = arith.addf %111, %136 : vector<2x128xf32>
    %138 = vector.broadcast %13 : f32 to vector<2x128xf32>
    %139 = arith.mulf %138, %131 : vector<2x128xf32>
    %140 = arith.addf %114, %139 : vector<2x128xf32>
    %141 = vector.broadcast %19 : f32 to vector<2x128xf32>
    %142 = arith.mulf %141, %131 : vector<2x128xf32>
    %143 = arith.addf %117, %142 : vector<2x128xf32>
    %144 = vector.broadcast %25 : f32 to vector<2x128xf32>
    %145 = arith.mulf %144, %131 : vector<2x128xf32>
    %146 = arith.addf %120, %145 : vector<2x128xf32>
    %147 = vector.broadcast %31 : f32 to vector<2x128xf32>
    %148 = arith.mulf %147, %131 : vector<2x128xf32>
    %149 = arith.addf %123, %148 : vector<2x128xf32>
    %150 = vector.broadcast %37 : f32 to vector<2x128xf32>
    %151 = arith.mulf %150, %131 : vector<2x128xf32>
    %152 = arith.addf %126, %151 : vector<2x128xf32>
    %153 = vector.broadcast %43 : f32 to vector<2x128xf32>
    %154 = arith.mulf %153, %131 : vector<2x128xf32>
    %155 = arith.addf %129, %154 : vector<2x128xf32>
    %c0_192 = arith.constant 0 : index
    %c2_193 = arith.constant 2 : index
    %c0_194 = arith.constant 0 : index
    %c0_195 = arith.constant 0 : index
    %156 = vector.load %arg6[%c0_192, %c2_193, %c0_194, %c0_195] : memref<1x6x2x128xf32, #tpu.memory_space<vmem>>, vector<1x1x2x128xf32>
    %157 = vector.shape_cast %156 : vector<1x1x2x128xf32> to vector<2x128xf32>
    %158 = vector.broadcast %2 : f32 to vector<2x128xf32>
    %159 = arith.mulf %158, %157 : vector<2x128xf32>
    %160 = arith.addf %134, %159 : vector<2x128xf32>
    %161 = vector.broadcast %8 : f32 to vector<2x128xf32>
    %162 = arith.mulf %161, %157 : vector<2x128xf32>
    %163 = arith.addf %137, %162 : vector<2x128xf32>
    %164 = vector.broadcast %14 : f32 to vector<2x128xf32>
    %165 = arith.mulf %164, %157 : vector<2x128xf32>
    %166 = arith.addf %140, %165 : vector<2x128xf32>
    %167 = vector.broadcast %20 : f32 to vector<2x128xf32>
    %168 = arith.mulf %167, %157 : vector<2x128xf32>
    %169 = arith.addf %143, %168 : vector<2x128xf32>
    %170 = vector.broadcast %26 : f32 to vector<2x128xf32>
    %171 = arith.mulf %170, %157 : vector<2x128xf32>
    %172 = arith.addf %146, %171 : vector<2x128xf32>
    %173 = vector.broadcast %32 : f32 to vector<2x128xf32>
    %174 = arith.mulf %173, %157 : vector<2x128xf32>
    %175 = arith.addf %149, %174 : vector<2x128xf32>
    %176 = vector.broadcast %38 : f32 to vector<2x128xf32>
    %177 = arith.mulf %176, %157 : vector<2x128xf32>
    %178 = arith.addf %152, %177 : vector<2x128xf32>
    %179 = vector.broadcast %44 : f32 to vector<2x128xf32>
    %180 = arith.mulf %179, %157 : vector<2x128xf32>
    %181 = arith.addf %155, %180 : vector<2x128xf32>
    %c0_196 = arith.constant 0 : index
    %c3_197 = arith.constant 3 : index
    %c0_198 = arith.constant 0 : index
    %c0_199 = arith.constant 0 : index
    %182 = vector.load %arg6[%c0_196, %c3_197, %c0_198, %c0_199] : memref<1x6x2x128xf32, #tpu.memory_space<vmem>>, vector<1x1x2x128xf32>
    %183 = vector.shape_cast %182 : vector<1x1x2x128xf32> to vector<2x128xf32>
    %184 = vector.broadcast %3 : f32 to vector<2x128xf32>
    %185 = arith.mulf %184, %183 : vector<2x128xf32>
    %186 = arith.addf %160, %185 : vector<2x128xf32>
    %187 = vector.broadcast %9 : f32 to vector<2x128xf32>
    %188 = arith.mulf %187, %183 : vector<2x128xf32>
    %189 = arith.addf %163, %188 : vector<2x128xf32>
    %190 = vector.broadcast %15 : f32 to vector<2x128xf32>
    %191 = arith.mulf %190, %183 : vector<2x128xf32>
    %192 = arith.addf %166, %191 : vector<2x128xf32>
    %193 = vector.broadcast %21 : f32 to vector<2x128xf32>
    %194 = arith.mulf %193, %183 : vector<2x128xf32>
    %195 = arith.addf %169, %194 : vector<2x128xf32>
    %196 = vector.broadcast %27 : f32 to vector<2x128xf32>
    %197 = arith.mulf %196, %183 : vector<2x128xf32>
    %198 = arith.addf %172, %197 : vector<2x128xf32>
    %199 = vector.broadcast %33 : f32 to vector<2x128xf32>
    %200 = arith.mulf %199, %183 : vector<2x128xf32>
    %201 = arith.addf %175, %200 : vector<2x128xf32>
    %202 = vector.broadcast %39 : f32 to vector<2x128xf32>
    %203 = arith.mulf %202, %183 : vector<2x128xf32>
    %204 = arith.addf %178, %203 : vector<2x128xf32>
    %205 = vector.broadcast %45 : f32 to vector<2x128xf32>
    %206 = arith.mulf %205, %183 : vector<2x128xf32>
    %207 = arith.addf %181, %206 : vector<2x128xf32>
    %c0_200 = arith.constant 0 : index
    %c4_201 = arith.constant 4 : index
    %c0_202 = arith.constant 0 : index
    %c0_203 = arith.constant 0 : index
    %208 = vector.load %arg6[%c0_200, %c4_201, %c0_202, %c0_203] : memref<1x6x2x128xf32, #tpu.memory_space<vmem>>, vector<1x1x2x128xf32>
    %209 = vector.shape_cast %208 : vector<1x1x2x128xf32> to vector<2x128xf32>
    %210 = vector.broadcast %4 : f32 to vector<2x128xf32>
    %211 = arith.mulf %210, %209 : vector<2x128xf32>
    %212 = arith.addf %186, %211 : vector<2x128xf32>
    %213 = vector.broadcast %10 : f32 to vector<2x128xf32>
    %214 = arith.mulf %213, %209 : vector<2x128xf32>
    %215 = arith.addf %189, %214 : vector<2x128xf32>
    %216 = vector.broadcast %16 : f32 to vector<2x128xf32>
    %217 = arith.mulf %216, %209 : vector<2x128xf32>
    %218 = arith.addf %192, %217 : vector<2x128xf32>
    %219 = vector.broadcast %22 : f32 to vector<2x128xf32>
    %220 = arith.mulf %219, %209 : vector<2x128xf32>
    %221 = arith.addf %195, %220 : vector<2x128xf32>
    %222 = vector.broadcast %28 : f32 to vector<2x128xf32>
    %223 = arith.mulf %222, %209 : vector<2x128xf32>
    %224 = arith.addf %198, %223 : vector<2x128xf32>
    %225 = vector.broadcast %34 : f32 to vector<2x128xf32>
    %226 = arith.mulf %225, %209 : vector<2x128xf32>
    %227 = arith.addf %201, %226 : vector<2x128xf32>
    %228 = vector.broadcast %40 : f32 to vector<2x128xf32>
    %229 = arith.mulf %228, %209 : vector<2x128xf32>
    %230 = arith.addf %204, %229 : vector<2x128xf32>
    %231 = vector.broadcast %46 : f32 to vector<2x128xf32>
    %232 = arith.mulf %231, %209 : vector<2x128xf32>
    %233 = arith.addf %207, %232 : vector<2x128xf32>
    %c0_204 = arith.constant 0 : index
    %c5_205 = arith.constant 5 : index
    %c0_206 = arith.constant 0 : index
    %c0_207 = arith.constant 0 : index
    %234 = vector.load %arg6[%c0_204, %c5_205, %c0_206, %c0_207] : memref<1x6x2x128xf32, #tpu.memory_space<vmem>>, vector<1x1x2x128xf32>
    %235 = vector.shape_cast %234 : vector<1x1x2x128xf32> to vector<2x128xf32>
    %236 = vector.broadcast %5 : f32 to vector<2x128xf32>
    %237 = arith.mulf %236, %235 : vector<2x128xf32>
    %238 = arith.addf %212, %237 : vector<2x128xf32>
    %239 = vector.broadcast %11 : f32 to vector<2x128xf32>
    %240 = arith.mulf %239, %235 : vector<2x128xf32>
    %241 = arith.addf %215, %240 : vector<2x128xf32>
    %242 = vector.broadcast %17 : f32 to vector<2x128xf32>
    %243 = arith.mulf %242, %235 : vector<2x128xf32>
    %244 = arith.addf %218, %243 : vector<2x128xf32>
    %245 = vector.broadcast %23 : f32 to vector<2x128xf32>
    %246 = arith.mulf %245, %235 : vector<2x128xf32>
    %247 = arith.addf %221, %246 : vector<2x128xf32>
    %248 = vector.broadcast %29 : f32 to vector<2x128xf32>
    %249 = arith.mulf %248, %235 : vector<2x128xf32>
    %250 = arith.addf %224, %249 : vector<2x128xf32>
    %251 = vector.broadcast %35 : f32 to vector<2x128xf32>
    %252 = arith.mulf %251, %235 : vector<2x128xf32>
    %253 = arith.addf %227, %252 : vector<2x128xf32>
    %254 = vector.broadcast %41 : f32 to vector<2x128xf32>
    %255 = arith.mulf %254, %235 : vector<2x128xf32>
    %256 = arith.addf %230, %255 : vector<2x128xf32>
    %257 = vector.broadcast %47 : f32 to vector<2x128xf32>
    %258 = arith.mulf %257, %235 : vector<2x128xf32>
    %259 = arith.addf %233, %258 : vector<2x128xf32>
    %c0_208 = arith.constant 0 : index
    %c0_209 = arith.constant 0 : index
    %c0_210 = arith.constant 0 : index
    %c0_211 = arith.constant 0 : index
    %260 = vector.load %arg7[%c0_208, %c0_209, %c0_210, %c0_211] : memref<1x4x2x128xf32, #tpu.memory_space<vmem>>, vector<1x1x2x128xf32>
    %261 = vector.shape_cast %260 : vector<1x1x2x128xf32> to vector<2x128xf32>
    %262 = vector.broadcast %48 : f32 to vector<2x128xf32>
    %263 = arith.mulf %262, %261 : vector<2x128xf32>
    %264 = arith.addf %238, %263 : vector<2x128xf32>
    %265 = vector.broadcast %52 : f32 to vector<2x128xf32>
    %266 = arith.mulf %265, %261 : vector<2x128xf32>
    %267 = arith.addf %241, %266 : vector<2x128xf32>
    %268 = vector.broadcast %56 : f32 to vector<2x128xf32>
    %269 = arith.mulf %268, %261 : vector<2x128xf32>
    %270 = arith.addf %244, %269 : vector<2x128xf32>
    %271 = vector.broadcast %60 : f32 to vector<2x128xf32>
    %272 = arith.mulf %271, %261 : vector<2x128xf32>
    %273 = arith.addf %247, %272 : vector<2x128xf32>
    %274 = vector.broadcast %64 : f32 to vector<2x128xf32>
    %275 = arith.mulf %274, %261 : vector<2x128xf32>
    %276 = arith.addf %250, %275 : vector<2x128xf32>
    %277 = vector.broadcast %68 : f32 to vector<2x128xf32>
    %278 = arith.mulf %277, %261 : vector<2x128xf32>
    %279 = arith.addf %253, %278 : vector<2x128xf32>
    %280 = vector.broadcast %72 : f32 to vector<2x128xf32>
    %281 = arith.mulf %280, %261 : vector<2x128xf32>
    %282 = arith.addf %256, %281 : vector<2x128xf32>
    %283 = vector.broadcast %76 : f32 to vector<2x128xf32>
    %284 = arith.mulf %283, %261 : vector<2x128xf32>
    %285 = arith.addf %259, %284 : vector<2x128xf32>
    %c0_212 = arith.constant 0 : index
    %c1_213 = arith.constant 1 : index
    %c0_214 = arith.constant 0 : index
    %c0_215 = arith.constant 0 : index
    %286 = vector.load %arg7[%c0_212, %c1_213, %c0_214, %c0_215] : memref<1x4x2x128xf32, #tpu.memory_space<vmem>>, vector<1x1x2x128xf32>
    %287 = vector.shape_cast %286 : vector<1x1x2x128xf32> to vector<2x128xf32>
    %288 = vector.broadcast %49 : f32 to vector<2x128xf32>
    %289 = arith.mulf %288, %287 : vector<2x128xf32>
    %290 = arith.addf %264, %289 : vector<2x128xf32>
    %291 = vector.broadcast %53 : f32 to vector<2x128xf32>
    %292 = arith.mulf %291, %287 : vector<2x128xf32>
    %293 = arith.addf %267, %292 : vector<2x128xf32>
    %294 = vector.broadcast %57 : f32 to vector<2x128xf32>
    %295 = arith.mulf %294, %287 : vector<2x128xf32>
    %296 = arith.addf %270, %295 : vector<2x128xf32>
    %297 = vector.broadcast %61 : f32 to vector<2x128xf32>
    %298 = arith.mulf %297, %287 : vector<2x128xf32>
    %299 = arith.addf %273, %298 : vector<2x128xf32>
    %300 = vector.broadcast %65 : f32 to vector<2x128xf32>
    %301 = arith.mulf %300, %287 : vector<2x128xf32>
    %302 = arith.addf %276, %301 : vector<2x128xf32>
    %303 = vector.broadcast %69 : f32 to vector<2x128xf32>
    %304 = arith.mulf %303, %287 : vector<2x128xf32>
    %305 = arith.addf %279, %304 : vector<2x128xf32>
    %306 = vector.broadcast %73 : f32 to vector<2x128xf32>
    %307 = arith.mulf %306, %287 : vector<2x128xf32>
    %308 = arith.addf %282, %307 : vector<2x128xf32>
    %309 = vector.broadcast %77 : f32 to vector<2x128xf32>
    %310 = arith.mulf %309, %287 : vector<2x128xf32>
    %311 = arith.addf %285, %310 : vector<2x128xf32>
    %c0_216 = arith.constant 0 : index
    %c2_217 = arith.constant 2 : index
    %c0_218 = arith.constant 0 : index
    %c0_219 = arith.constant 0 : index
    %312 = vector.load %arg7[%c0_216, %c2_217, %c0_218, %c0_219] : memref<1x4x2x128xf32, #tpu.memory_space<vmem>>, vector<1x1x2x128xf32>
    %313 = vector.shape_cast %312 : vector<1x1x2x128xf32> to vector<2x128xf32>
    %314 = vector.broadcast %50 : f32 to vector<2x128xf32>
    %315 = arith.mulf %314, %313 : vector<2x128xf32>
    %316 = arith.addf %290, %315 : vector<2x128xf32>
    %317 = vector.broadcast %54 : f32 to vector<2x128xf32>
    %318 = arith.mulf %317, %313 : vector<2x128xf32>
    %319 = arith.addf %293, %318 : vector<2x128xf32>
    %320 = vector.broadcast %58 : f32 to vector<2x128xf32>
    %321 = arith.mulf %320, %313 : vector<2x128xf32>
    %322 = arith.addf %296, %321 : vector<2x128xf32>
    %323 = vector.broadcast %62 : f32 to vector<2x128xf32>
    %324 = arith.mulf %323, %313 : vector<2x128xf32>
    %325 = arith.addf %299, %324 : vector<2x128xf32>
    %326 = vector.broadcast %66 : f32 to vector<2x128xf32>
    %327 = arith.mulf %326, %313 : vector<2x128xf32>
    %328 = arith.addf %302, %327 : vector<2x128xf32>
    %329 = vector.broadcast %70 : f32 to vector<2x128xf32>
    %330 = arith.mulf %329, %313 : vector<2x128xf32>
    %331 = arith.addf %305, %330 : vector<2x128xf32>
    %332 = vector.broadcast %74 : f32 to vector<2x128xf32>
    %333 = arith.mulf %332, %313 : vector<2x128xf32>
    %334 = arith.addf %308, %333 : vector<2x128xf32>
    %335 = vector.broadcast %78 : f32 to vector<2x128xf32>
    %336 = arith.mulf %335, %313 : vector<2x128xf32>
    %337 = arith.addf %311, %336 : vector<2x128xf32>
    %c0_220 = arith.constant 0 : index
    %c3_221 = arith.constant 3 : index
    %c0_222 = arith.constant 0 : index
    %c0_223 = arith.constant 0 : index
    %338 = vector.load %arg7[%c0_220, %c3_221, %c0_222, %c0_223] : memref<1x4x2x128xf32, #tpu.memory_space<vmem>>, vector<1x1x2x128xf32>
    %339 = vector.shape_cast %338 : vector<1x1x2x128xf32> to vector<2x128xf32>
    %340 = vector.broadcast %51 : f32 to vector<2x128xf32>
    %341 = arith.mulf %340, %339 : vector<2x128xf32>
    %342 = arith.addf %316, %341 : vector<2x128xf32>
    %343 = vector.broadcast %55 : f32 to vector<2x128xf32>
    %344 = arith.mulf %343, %339 : vector<2x128xf32>
    %345 = arith.addf %319, %344 : vector<2x128xf32>
    %346 = vector.broadcast %59 : f32 to vector<2x128xf32>
    %347 = arith.mulf %346, %339 : vector<2x128xf32>
    %348 = arith.addf %322, %347 : vector<2x128xf32>
    %349 = vector.broadcast %63 : f32 to vector<2x128xf32>
    %350 = arith.mulf %349, %339 : vector<2x128xf32>
    %351 = arith.addf %325, %350 : vector<2x128xf32>
    %352 = vector.broadcast %67 : f32 to vector<2x128xf32>
    %353 = arith.mulf %352, %339 : vector<2x128xf32>
    %354 = arith.addf %328, %353 : vector<2x128xf32>
    %355 = vector.broadcast %71 : f32 to vector<2x128xf32>
    %356 = arith.mulf %355, %339 : vector<2x128xf32>
    %357 = arith.addf %331, %356 : vector<2x128xf32>
    %358 = vector.broadcast %75 : f32 to vector<2x128xf32>
    %359 = arith.mulf %358, %339 : vector<2x128xf32>
    %360 = arith.addf %334, %359 : vector<2x128xf32>
    %361 = vector.broadcast %79 : f32 to vector<2x128xf32>
    %362 = arith.mulf %361, %339 : vector<2x128xf32>
    %363 = arith.addf %337, %362 : vector<2x128xf32>
    %c8 = arith.constant 8 : index
    %c0_224 = arith.constant 0 : index
    %c0_225 = arith.constant 0 : index
    %364 = vector.load %arg5[%c8, %c0_224, %c0_225] : memref<9x16x128xf32, #tpu.memory_space<vmem>>, vector<1x2x128xf32>
    %365 = vector.shape_cast %364 : vector<1x2x128xf32> to vector<2x128xf32>
    %cst = arith.constant 0.000000e+00 : f32
    %366 = vector.broadcast %cst : f32 to vector<2x128xf32>
    %367 = arith.maximumf %342, %366 : vector<2x128xf32>
    %368 = vector.broadcast %80 : f32 to vector<2x128xf32>
    %369 = arith.mulf %368, %367 : vector<2x128xf32>
    %370 = arith.addf %365, %369 : vector<2x128xf32>
    %cst_226 = arith.constant 0.000000e+00 : f32
    %371 = vector.broadcast %cst_226 : f32 to vector<2x128xf32>
    %372 = arith.maximumf %345, %371 : vector<2x128xf32>
    %373 = vector.broadcast %81 : f32 to vector<2x128xf32>
    %374 = arith.mulf %373, %372 : vector<2x128xf32>
    %375 = arith.addf %370, %374 : vector<2x128xf32>
    %cst_227 = arith.constant 0.000000e+00 : f32
    %376 = vector.broadcast %cst_227 : f32 to vector<2x128xf32>
    %377 = arith.maximumf %348, %376 : vector<2x128xf32>
    %378 = vector.broadcast %82 : f32 to vector<2x128xf32>
    %379 = arith.mulf %378, %377 : vector<2x128xf32>
    %380 = arith.addf %375, %379 : vector<2x128xf32>
    %cst_228 = arith.constant 0.000000e+00 : f32
    %381 = vector.broadcast %cst_228 : f32 to vector<2x128xf32>
    %382 = arith.maximumf %351, %381 : vector<2x128xf32>
    %383 = vector.broadcast %83 : f32 to vector<2x128xf32>
    %384 = arith.mulf %383, %382 : vector<2x128xf32>
    %385 = arith.addf %380, %384 : vector<2x128xf32>
    %cst_229 = arith.constant 0.000000e+00 : f32
    %386 = vector.broadcast %cst_229 : f32 to vector<2x128xf32>
    %387 = arith.maximumf %354, %386 : vector<2x128xf32>
    %388 = vector.broadcast %84 : f32 to vector<2x128xf32>
    %389 = arith.mulf %388, %387 : vector<2x128xf32>
    %390 = arith.addf %385, %389 : vector<2x128xf32>
    %cst_230 = arith.constant 0.000000e+00 : f32
    %391 = vector.broadcast %cst_230 : f32 to vector<2x128xf32>
    %392 = arith.maximumf %357, %391 : vector<2x128xf32>
    %393 = vector.broadcast %85 : f32 to vector<2x128xf32>
    %394 = arith.mulf %393, %392 : vector<2x128xf32>
    %395 = arith.addf %390, %394 : vector<2x128xf32>
    %cst_231 = arith.constant 0.000000e+00 : f32
    %396 = vector.broadcast %cst_231 : f32 to vector<2x128xf32>
    %397 = arith.maximumf %360, %396 : vector<2x128xf32>
    %398 = vector.broadcast %86 : f32 to vector<2x128xf32>
    %399 = arith.mulf %398, %397 : vector<2x128xf32>
    %400 = arith.addf %395, %399 : vector<2x128xf32>
    %cst_232 = arith.constant 0.000000e+00 : f32
    %401 = vector.broadcast %cst_232 : f32 to vector<2x128xf32>
    %402 = arith.maximumf %363, %401 : vector<2x128xf32>
    %403 = vector.broadcast %87 : f32 to vector<2x128xf32>
    %404 = arith.mulf %403, %402 : vector<2x128xf32>
    %405 = arith.addf %400, %404 : vector<2x128xf32>
    %cst_233 = arith.constant 0.000000e+00 : f32
    %406 = vector.broadcast %cst_233 : f32 to vector<2x128xf32>
    %407 = arith.subf %406, %405 : vector<2x128xf32>
    %408 = math.exp %407 : vector<2x128xf32>
    %cst_234 = arith.constant 1.000000e+00 : f32
    %409 = vector.broadcast %cst_234 : f32 to vector<2x128xf32>
    %410 = arith.addf %409, %408 : vector<2x128xf32>
    %cst_235 = arith.constant 1.000000e+00 : f32
    %411 = vector.broadcast %cst_235 : f32 to vector<2x128xf32>
    %412 = arith.divf %411, %410 : vector<2x128xf32>
    %c0_236 = arith.constant 0 : index
    %c0_237 = arith.constant 0 : index
    %c0_238 = arith.constant 0 : index
    %c0_239 = arith.constant 0 : index
    %413 = vector.load %arg7[%c0_236, %c0_237, %c0_238, %c0_239] : memref<1x4x2x128xf32, #tpu.memory_space<vmem>>, vector<1x1x2x128xf32>
    %414 = vector.shape_cast %413 : vector<1x1x2x128xf32> to vector<2x128xf32>
    %415 = arith.mulf %414, %412 : vector<2x128xf32>
    %c0_240 = arith.constant 0 : index
    %c0_241 = arith.constant 0 : index
    %c0_242 = arith.constant 0 : index
    %c0_243 = arith.constant 0 : index
    %416 = vector.load %arg8[%c0_240, %c0_241, %c0_242, %c0_243] : memref<1x4x2x128xf32, #tpu.memory_space<vmem>>, vector<1x1x2x128xf32>
    %417 = vector.shape_cast %416 : vector<1x1x2x128xf32> to vector<2x128xf32>
    %418 = vector.shape_cast %415 : vector<2x128xf32> to vector<1x1x2x128xf32>
    tpu.vector_store %arg8[%c0_240, %c0_241, %c0_242, %c0_243], %418 {strides = array<i32>} : memref<1x4x2x128xf32, #tpu.memory_space<vmem>>, vector<1x1x2x128xf32>,
    %c0_244 = arith.constant 0 : index
    %c1_245 = arith.constant 1 : index
    %c0_246 = arith.constant 0 : index
    %c0_247 = arith.constant 0 : index
    %419 = vector.load %arg7[%c0_244, %c1_245, %c0_246, %c0_247] : memref<1x4x2x128xf32, #tpu.memory_space<vmem>>, vector<1x1x2x128xf32>
    %420 = vector.shape_cast %419 : vector<1x1x2x128xf32> to vector<2x128xf32>
    %421 = arith.mulf %420, %412 : vector<2x128xf32>
    %c0_248 = arith.constant 0 : index
    %c1_249 = arith.constant 1 : index
    %c0_250 = arith.constant 0 : index
    %c0_251 = arith.constant 0 : index
    %422 = vector.load %arg8[%c0_248, %c1_249, %c0_250, %c0_251] : memref<1x4x2x128xf32, #tpu.memory_space<vmem>>, vector<1x1x2x128xf32>
    %423 = vector.shape_cast %422 : vector<1x1x2x128xf32> to vector<2x128xf32>
    %424 = vector.shape_cast %421 : vector<2x128xf32> to vector<1x1x2x128xf32>
    tpu.vector_store %arg8[%c0_248, %c1_249, %c0_250, %c0_251], %424 {strides = array<i32>} : memref<1x4x2x128xf32, #tpu.memory_space<vmem>>, vector<1x1x2x128xf32>,
    %c0_252 = arith.constant 0 : index
    %c2_253 = arith.constant 2 : index
    %c0_254 = arith.constant 0 : index
    %c0_255 = arith.constant 0 : index
    %425 = vector.load %arg7[%c0_252, %c2_253, %c0_254, %c0_255] : memref<1x4x2x128xf32, #tpu.memory_space<vmem>>, vector<1x1x2x128xf32>
    %426 = vector.shape_cast %425 : vector<1x1x2x128xf32> to vector<2x128xf32>
    %427 = arith.mulf %426, %412 : vector<2x128xf32>
    %c0_256 = arith.constant 0 : index
    %c2_257 = arith.constant 2 : index
    %c0_258 = arith.constant 0 : index
    %c0_259 = arith.constant 0 : index
    %428 = vector.load %arg8[%c0_256, %c2_257, %c0_258, %c0_259] : memref<1x4x2x128xf32, #tpu.memory_space<vmem>>, vector<1x1x2x128xf32>
    %429 = vector.shape_cast %428 : vector<1x1x2x128xf32> to vector<2x128xf32>
    %430 = vector.shape_cast %427 : vector<2x128xf32> to vector<1x1x2x128xf32>
    tpu.vector_store %arg8[%c0_256, %c2_257, %c0_258, %c0_259], %430 {strides = array<i32>} : memref<1x4x2x128xf32, #tpu.memory_space<vmem>>, vector<1x1x2x128xf32>,
    %c0_260 = arith.constant 0 : index
    %c3_261 = arith.constant 3 : index
    %c0_262 = arith.constant 0 : index
    %c0_263 = arith.constant 0 : index
    %431 = vector.load %arg7[%c0_260, %c3_261, %c0_262, %c0_263] : memref<1x4x2x128xf32, #tpu.memory_space<vmem>>, vector<1x1x2x128xf32>
    %432 = vector.shape_cast %431 : vector<1x1x2x128xf32> to vector<2x128xf32>
    %433 = arith.mulf %432, %412 : vector<2x128xf32>
    %c0_264 = arith.constant 0 : index
    %c3_265 = arith.constant 3 : index
    %c0_266 = arith.constant 0 : index
    %c0_267 = arith.constant 0 : index
    %434 = vector.load %arg8[%c0_264, %c3_265, %c0_266, %c0_267] : memref<1x4x2x128xf32, #tpu.memory_space<vmem>>, vector<1x1x2x128xf32>
    %435 = vector.shape_cast %434 : vector<1x1x2x128xf32> to vector<2x128xf32>
    %436 = vector.shape_cast %433 : vector<2x128xf32> to vector<1x1x2x128xf32>
    tpu.vector_store %arg8[%c0_264, %c3_265, %c0_266, %c0_267], %436 {strides = array<i32>} : memref<1x4x2x128xf32, #tpu.memory_space<vmem>>, vector<1x1x2x128xf32>,
    return
  }
  func.func @transform_0(%arg0: i32, %arg1: i32) -> (i32, i32) {
    %c0_i32 = arith.constant 0 : i32
    %c0_i32_0 = arith.constant 0 : i32
    %c0_i32_1 = arith.constant 0 : i32
    return %c0_i32, %c0_i32_0 : i32, i32
  }
  func.func @transform_1(%arg0: i32, %arg1: i32) -> (i32, i32) {
    %c0_i32 = arith.constant 0 : i32
    %c0_i32_0 = arith.constant 0 : i32
    %c0_i32_1 = arith.constant 0 : i32
    return %c0_i32, %c0_i32_0 : i32, i32
  }
  func.func @transform_2(%arg0: i32, %arg1: i32) -> i32 {
    %c0_i32 = arith.constant 0 : i32
    %c0_i32_0 = arith.constant 0 : i32
    return %c0_i32 : i32
  }
  func.func @transform_3(%arg0: i32, %arg1: i32) -> (i32, i32, i32) {
    %c0_i32 = arith.constant 0 : i32
    %c0_i32_0 = arith.constant 0 : i32
    %c0_i32_1 = arith.constant 0 : i32
    %c0_i32_2 = arith.constant 0 : i32
    return %c0_i32, %c0_i32_0, %c0_i32_1 : i32, i32, i32
  }
  func.func @transform_4(%arg0: i32, %arg1: i32) -> (i32, i32, i32, i32) {
    %c0_i32 = arith.constant 0 : i32
    %c0_i32_0 = arith.constant 0 : i32
    %c0_i32_1 = arith.constant 0 : i32
    return %arg0, %c0_i32, %arg1, %c0_i32_0 : i32, i32, i32, i32
  }
  func.func @transform_5(%arg0: i32, %arg1: i32) -> (i32, i32, i32, i32) {
    %c0_i32 = arith.constant 0 : i32
    %c0_i32_0 = arith.constant 0 : i32
    %c0_i32_1 = arith.constant 0 : i32
    return %arg0, %c0_i32, %arg1, %c0_i32_0 : i32, i32, i32, i32
  }
  func.func @transform_6(%arg0: i32, %arg1: i32) -> (i32, i32, i32, i32) {
    %c0_i32 = arith.constant 0 : i32
    %c0_i32_0 = arith.constant 0 : i32
    %c0_i32_1 = arith.constant 0 : i32
    return %arg0, %c0_i32, %arg1, %c0_i32_0 : i32, i32, i32, i32
  }
}

</mosaic_0001>

<llo_original>
// kernel: tpu_custom_call.1
$region0: #{tpu_custom_call.1}
  #allocation0 [shape = 'u32[]', space=smem, size = 0x4, offset = 0x4, fixed_abs, tag = 'smem constant byte address 0x4 - core index']
  #allocation1 [shape = 'u32[144,128]{1,0:T(1,128)}', space=vmem, size = 0x12000, scoped, tag = 'internal scratch']
  %s0 = inlined_call_operand.hbm [shape: f32[8,6], index: 0, kind: input, shape index: {}]
  %s1 = inlined_call_operand.vmem [shape: f32[8,4], index: 1, kind: input, shape index: {}]
  %s2 = inlined_call_operand.vmem [shape: f32[8], index: 2, kind: input, shape index: {}]
  %s3 = inlined_call_operand.hbm [shape: f32[9,16,128], index: 3, kind: input, shape index: {}]
  %s4 = inlined_call_operand.vmem [shape: f32[2,6,2,128], index: 4, kind: input, shape index: {}]
  %s5 = inlined_call_operand.hbm [shape: f32[2,4,2,128], index: 5, kind: input, shape index: {}]
  %s6 = inlined_call_operand.hbm [shape: f32[2,4,2,128], index: 6, kind: output, shape index: {}]
  %s7 = sld [smem:[#allocation0]]
  $region77: #{tpu_custom_call.1} parent=0
    _
  %s9 = ssub.s32 1, %s7
  %s10 = scalar_select 0, %s9, %s7
  $region1: #{tpu_custom_call.1} parent=0
    #allocation2 [shape = 'u8[4096]{0}', space=smem, size = 0x1000, scoped, tag = 'input window, operand 0, single buffered']
    #allocation3 [shape = 's32[2]{0}', space=sflag, size = 0x8, scoped, tag = 'scoped memory for tpu_custom_call.1']
    #allocation4 [shape = 's32[2]{0}', space=sflag, size = 0x8, scoped, tag = 'scoped memory for tpu_custom_call.1']
    #allocation5 [shape = 's32[2]{0}', space=sflag, size = 0x8, scoped, tag = 'scoped memory for tpu_custom_call.1']
    #allocation6 [shape = 's32[2]{0}', space=sflag, size = 0x8, scoped, tag = 'scoped memory for tpu_custom_call.1']
    #allocation7 [shape = 'u8[4096]{0}', space=smem, size = 0x1000, scoped, tag = 'input window, operand 1, single buffered']
    #allocation8 [shape = 'u8[512]{0}', space=smem, size = 0x200, scoped, tag = 'input window, operand 2, single buffered']
    #allocation9 [shape = 's32[1]{0}', space=sflag, size = 0x4, scoped, tag = 'scoped memory for tpu_custom_call.1']
    #allocation10 [shape = 'u8[73728]{0}', space=vmem, size = 0x12000, scoped, tag = 'input window, operand 3, single buffered']
    #allocation11 [shape = 'u8[8192]{0}', space=vmem, size = 0x2000, scoped, tag = 'input window, operand 5']
    #allocation12 [shape = 's32[2]{0}', space=sflag, size = 0x8, scoped, tag = 'scoped memory for tpu_custom_call.1']
    #allocation13 [shape = 'u8[8192]{0}', space=vmem, size = 0x2000, scoped, tag = 'output window, operand 0']
    %11 = vsyncpa [#allocation5], 0
    %12 = vsyncpa [#allocation6], 0
    %13 = vsyncpa [#allocation9], 0
    %14 = vsyncpa [#allocation3], 0
    %15 = vsyncpa [#allocation12], 0
    %s16 = scalar_lea.sflag [#allocation12], 1
    %17 = vsyncpa %s16, 0
    %18 = vsyncpa [#allocation4], 0
    %s19 = scalar_lea.sflag [#allocation4], 1
    %20 = vsyncpa %s19, 0
    loop: start=0, step=1, limit=4
    $region2: #{tpu_custom_call.1} parent=1 // loop_pre_header
      _
    $region3: #{tpu_custom_call.1} parent=1 // loop_header
      %s22 = sphi 0, %s26
      %p23 = scmp.ge.s32.totalorder %s22, 4
      %s29 = sphi 0, %s41
      %s30 = sphi 0, %s37
      %s31 = sphi 0, %s29
      %s32 = sphi 0, %s30
      %s33 = sphi 0, %s31
      %s34 = sphi 0, %s32
      %s42 = sphi 0, %s42
      %s44 = sphi 0, %s42
      %s45 = sphi 0, %s44
      %s59 = sphi 0, %s45
      %s63 = sphi 0, %s63
      %s65 = sphi 0, %s63
      %s66 = sphi 0, %s65
      %s80 = sphi 0, %s66
      %s84 = sphi 0, %s84
      %s86 = sphi 0, %s84
      %s87 = sphi 0, %s86
      %s101 = sphi 0, %s87
      %s105 = sphi 0, %s105
      %s107 = sphi 0, %s105
      %s108 = sphi 0, %s107
      %s122 = sphi 0, %s108
      %s130 = sphi 0, %s132
      %s133 = sphi 0, %s130
      %s134 = sphi 0, %s133
      %s150 = sphi 0, %s134
      %s158 = sphi 0, %s160
      %s161 = sphi 0, %s158
      %s162 = sphi 0, %s161
      %s178 = sphi 0, %s162
      %s186 = sphi 0, %s188
      %s189 = sphi 0, %s186
      %s190 = sphi 0, %s189
      %s206 = sphi 0, %s190
    $region4: #{tpu_custom_call.1} parent=1 // loop_header_branch
      %25 = sbr.rel (%p23) target = $region8
    $region5: #{tpu_custom_call.1} parent=1 // loop_body
      %s27 = ssub.s32 %s22, 1
      %s28 = ssub.s32 %s22, 2
      %s35 = sadd.s32 1, %s30
      %p36 = scmp.ge.s32.totalorder %s35, 1
      %s37 = scalar_select %p36, 0, %s35
      %s38 = sadd.s32 1, %s29
      %s39 = scalar_select %p36, %s38, %s29
      %p40 = scmp.ge.s32.totalorder %s39, 2
      %s41 = scalar_select %p40, 0, %s39
      %s43 = sadd.s32 %s42, 1
      %p46 = scmp.eq.s32.totalorder %s22, 1
      %p47 = scmp.ne.s32.totalorder %s42, %s44
      %p48 = scmp.eq.s32.totalorder %s22, 0
      %p49 = por %p47, %p48
      %p50 = scmp.ne.s32.totalorder %s42, %s44
      %p51 = scmp.eq.s32.totalorder %s27, 1
      %p52 = por %p50, %p51
      %p53 = scmp.ne.s32.totalorder %s44, %s45
      %p54 = scmp.eq.s32.totalorder %s27, 0
      %p55 = por %p53, %p54
      %p56 = scmp.ne.s32.totalorder %s44, %s45
      %p57 = scmp.eq.s32.totalorder %s28, 1
      %p58 = por %p56, %p57
      %p60 = scmp.ne.s32.totalorder %s45, %s59
      %p61 = scmp.eq.s32.totalorder %s28, 0
      %p62 = por %p60, %p61
      %s64 = sadd.s32 %s63, 1
      %p67 = scmp.eq.s32.totalorder %s22, 1
      %p68 = scmp.ne.s32.totalorder %s63, %s65
      %p69 = scmp.eq.s32.totalorder %s22, 0
      %p70 = por %p68, %p69
      %p71 = scmp.ne.s32.totalorder %s63, %s65
      %p72 = scmp.eq.s32.totalorder %s27, 1
      %p73 = por %p71, %p72
      %p74 = scmp.ne.s32.totalorder %s65, %s66
      %p75 = scmp.eq.s32.totalorder %s27, 0
      %p76 = por %p74, %p75
      %p77 = scmp.ne.s32.totalorder %s65, %s66
      %p78 = scmp.eq.s32.totalorder %s28, 1
      %p79 = por %p77, %p78
      %p81 = scmp.ne.s32.totalorder %s66, %s80
      %p82 = scmp.eq.s32.totalorder %s28, 0
      %p83 = por %p81, %p82
      %s85 = sadd.s32 %s84, 1
      %p88 = scmp.eq.s32.totalorder %s22, 1
      %p89 = scmp.ne.s32.totalorder %s84, %s86
      %p90 = scmp.eq.s32.totalorder %s22, 0
      %p91 = por %p89, %p90
      %p92 = scmp.ne.s32.totalorder %s84, %s86
      %p93 = scmp.eq.s32.totalorder %s27, 1
      %p94 = por %p92, %p93
      %p95 = scmp.ne.s32.totalorder %s86, %s87
      %p96 = scmp.eq.s32.totalorder %s27, 0
      %p97 = por %p95, %p96
      %p98 = scmp.ne.s32.totalorder %s86, %s87
      %p99 = scmp.eq.s32.totalorder %s28, 1
      %p100 = por %p98, %p99
      %p102 = scmp.ne.s32.totalorder %s87, %s101
      %p103 = scmp.eq.s32.totalorder %s28, 0
      %p104 = por %p102, %p103
      %s106 = sadd.s32 %s105, 1
      %p109 = scmp.eq.s32.totalorder %s22, 1
      %p110 = scmp.ne.s32.totalorder %s105, %s107
      %p111 = scmp.eq.s32.totalorder %s22, 0
      %p112 = por %p110, %p111
      %p113 = scmp.ne.s32.totalorder %s105, %s107
      %p114 = scmp.eq.s32.totalorder %s27, 1
      %p115 = por %p113, %p114
      %p116 = scmp.ne.s32.totalorder %s107, %s108
      %p117 = scmp.eq.s32.totalorder %s27, 0
      %p118 = por %p116, %p117
      %p119 = scmp.ne.s32.totalorder %s107, %s108
      %p120 = scmp.eq.s32.totalorder %s28, 1
      %p121 = por %p119, %p120
      %p123 = scmp.ne.s32.totalorder %s108, %s122
      %p124 = scmp.eq.s32.totalorder %s28, 0
      %p125 = por %p123, %p124
      %s126 = ssub.s32 %s29, %s41
      %s127 = ssub.s32 %s30, %s37
      %s128 = sor.u32 %s126, %s127
      %p129 = scmp.eq.s32.totalorder %s128, 0
      %s131 = sadd.s32 %s130, 1
      %s132 = scalar_select %p129, %s130, %s131
      %p135 = pneg %p129
      %p136 = scmp.eq.s32.totalorder %s22, 1
      %p137 = por %p135, %p136
      %p138 = scmp.ne.s32.totalorder %s130, %s133
      %p139 = scmp.eq.s32.totalorder %s22, 0
      %p140 = por %p138, %p139
      %p141 = scmp.ne.s32.totalorder %s130, %s133
      %p142 = scmp.eq.s32.totalorder %s27, 1
      %p143 = por %p141, %p142
      %p144 = scmp.ne.s32.totalorder %s133, %s134
      %p145 = scmp.eq.s32.totalorder %s27, 0
      %p146 = por %p144, %p145
      %p147 = scmp.ne.s32.totalorder %s133, %s134
      %p148 = scmp.eq.s32.totalorder %s28, 1
      %p149 = por %p147, %p148
      %p151 = scmp.ne.s32.totalorder %s134, %s150
      %p152 = scmp.eq.s32.totalorder %s28, 0
      %p153 = por %p151, %p152
      %s154 = ssub.s32 %s29, %s41
      %s155 = ssub.s32 %s30, %s37
      %s156 = sor.u32 %s154, %s155
      %p157 = scmp.eq.s32.totalorder %s156, 0
      %s159 = sadd.s32 %s158, 1
      %s160 = scalar_select %p157, %s158, %s159
      %p163 = pneg %p157
      %p164 = scmp.eq.s32.totalorder %s22, 1
      %p165 = por %p163, %p164
      %p166 = scmp.ne.s32.totalorder %s158, %s161
      %p167 = scmp.eq.s32.totalorder %s22, 0
      %p168 = por %p166, %p167
      %p169 = scmp.ne.s32.totalorder %s158, %s161
      %p170 = scmp.eq.s32.totalorder %s27, 1
      %p171 = por %p169, %p170
      %p172 = scmp.ne.s32.totalorder %s161, %s162
      %p173 = scmp.eq.s32.totalorder %s27, 0
      %p174 = por %p172, %p173
      %p175 = scmp.ne.s32.totalorder %s161, %s162
      %p176 = scmp.eq.s32.totalorder %s28, 1
      %p177 = por %p175, %p176
      %p179 = scmp.ne.s32.totalorder %s162, %s178
      %p180 = scmp.eq.s32.totalorder %s28, 0
      %p181 = por %p179, %p180
      %s182 = ssub.s32 %s29, %s41
      %s183 = ssub.s32 %s30, %s37
      %s184 = sor.u32 %s182, %s183
      %p185 = scmp.eq.s32.totalorder %s184, 0
      %s187 = sadd.s32 %s186, 1
      %s188 = scalar_select %p185, %s186, %s187
      %p191 = pneg %p185
      %p192 = scmp.eq.s32.totalorder %s22, 1
      %p193 = por %p191, %p192
      %p194 = scmp.ne.s32.totalorder %s186, %s189
      %p195 = scmp.eq.s32.totalorder %s22, 0
      %p196 = por %p194, %p195
      %p197 = scmp.ne.s32.totalorder %s186, %s189
      %p198 = scmp.eq.s32.totalorder %s27, 1
      %p199 = por %p197, %p198
      %p200 = scmp.ne.s32.totalorder %s189, %s190
      %p201 = scmp.eq.s32.totalorder %s27, 0
      %p202 = por %p200, %p201
      %p203 = scmp.ne.s32.totalorder %s189, %s190
      %p204 = scmp.eq.s32.totalorder %s28, 1
      %p205 = por %p203, %p204
      %p207 = scmp.ne.s32.totalorder %s190, %s206
      %p208 = scmp.eq.s32.totalorder %s28, 0
      %p209 = por %p207, %p208
      %p210 = scmp.le.s32.totalorder 1, %s22
      %p211 = scmp.lt.s32.totalorder %s22, 3
      %p212 = pnand %p210, %p211
      %p213 = pneg %p212
      // Predicated region
      $region9: #{tpu_custom_call.1} parent=5 // pred_check
        _
      $region10: #{tpu_custom_call.1} parent=5 // pred_check_branch
        %215 = sbr.rel (%p212) target = $region12
      $region11: #{tpu_custom_call.1} parent=5 // pred_region
        %s216 = ssub.s32 %s22, 1
        // Predicated region
        $region13: #{tpu_custom_call.1} parent=11 // pred_check
          %p217 = pneg %p55
        $region14: #{tpu_custom_call.1} parent=11 // pred_check_branch
          %219 = sbr.rel (%p217) target = $region16
        $region15: #{tpu_custom_call.1} parent=11 // pred_region
          %s221 = ssub.s32 128, 128
          %222 = vsyncadd [#allocation5], %s221
          %225 = dma.hbm_to_smem %s0, 128, [#allocation2], [#allocation5]
        $region16: #{tpu_custom_call.1} parent=11 // pred_fallthru
          _
        // Predicated region
        $region17: #{tpu_custom_call.1} parent=11 // pred_check
          %p226 = pneg %p76
        $region18: #{tpu_custom_call.1} parent=11 // pred_check_branch
          %228 = sbr.rel (%p226) target = $region20
        $region19: #{tpu_custom_call.1} parent=11 // pred_region
          %s230 = ssub.s32 128, 128
          %231 = vsyncadd [#allocation6], %s230
          %s233 = sshll.u32 %s1, 4
          %s234 = int_to_ptr.vmem [resolvable:$true] %s233
          %236 = dma.vmem_to_smem %s234, 128, [#allocation7], [#allocation6]
        $region20: #{tpu_custom_call.1} parent=11 // pred_fallthru
          _
        // Predicated region
        $region21: #{tpu_custom_call.1} parent=11 // pred_check
          %p237 = pneg %p97
        $region22: #{tpu_custom_call.1} parent=11 // pred_check_branch
          %239 = sbr.rel (%p237) target = $region24
        $region23: #{tpu_custom_call.1} parent=11 // pred_region
          %s241 = ssub.s32 16, 16
          %242 = vsyncadd [#allocation9], %s241
          %s244 = sshll.u32 %s2, 4
          %s245 = int_to_ptr.vmem [resolvable:$true] %s244
          %247 = dma.vmem_to_smem %s245, 16, [#allocation8], [#allocation9]
        $region24: #{tpu_custom_call.1} parent=11 // pred_fallthru
          _
        // Predicated region
        $region25: #{tpu_custom_call.1} parent=11 // pred_check
          %p248 = pneg %p118
        $region26: #{tpu_custom_call.1} parent=11 // pred_check_branch
          %250 = sbr.rel (%p248) target = $region28
        $region27: #{tpu_custom_call.1} parent=11 // pred_region
          %s252 = ssub.s32 2304, 2304
          %253 = vsyncadd [#allocation3], %s252
          %s254 = sshll.u32 [#allocation10], 4
          %s255 = int_to_ptr.vmem [resolvable:$true] %s254
          %260 = dma.hbm_to_vmem [thread:$0]  %s3, 2304, %s255, [#allocation3], 128, 128, 8
        $region28: #{tpu_custom_call.1} parent=11 // pred_fallthru
          _
      $region12: #{tpu_custom_call.1} parent=5 // pred_fallthru
        _
      %p261 = scmp.lt.s32.totalorder %s22, 2
      // Predicated region
      $region29: #{tpu_custom_call.1} parent=5 // pred_check
        %p262 = pneg %p261
      $region30: #{tpu_custom_call.1} parent=5 // pred_check_branch
        %264 = sbr.rel (%p262) target = $region32
      $region31: #{tpu_custom_call.1} parent=5 // pred_region
        // Predicated region
        $region33: #{tpu_custom_call.1} parent=31 // pred_check
          %p265 = pneg %p140
        $region34: #{tpu_custom_call.1} parent=31 // pred_check_branch
          %267 = sbr.rel (%p265) target = $region36
        $region35: #{tpu_custom_call.1} parent=31 // pred_region
          %p268 = scmp.lt.s32.totalorder %s29, 1
          %s269 = scalar_select %p268, %s29, 1
          %p270 = scmp.lt.s32.totalorder %s30, 0
          %s271 = scalar_select %p270, %s30, 0
          %s272 = smul.addr %s269, 6
          %s273 = sadd.s32 %s271, %s272
          %s274 = smul.addr %s273, 2
          %s275 = scalar_lea.vmem %s4, %s274
        $region36: #{tpu_custom_call.1} parent=31 // pred_fallthru
          _
        // Predicated region
        $region37: #{tpu_custom_call.1} parent=31 // pred_check
          %p276 = pneg %p168
        $region38: #{tpu_custom_call.1} parent=31 // pred_check_branch
          %278 = sbr.rel (%p276) target = $region40
        $region39: #{tpu_custom_call.1} parent=31 // pred_region
          %s279 = sand.u32 %s158, 1
          %s280 = scalar_lea.sflag [#allocation12], %s279
          %s281 = sand.u32 %s158, 1
          %s282 = smul.addr %s281, 8
          %s283 = scalar_lea.vmem [#allocation11], %s282
          %s285 = ssub.s32 128, 128
          %286 = vsyncadd %s280, %s285
          %s287 = smul.addr %s29, 4
          %s288 = sadd.s32 %s30, %s287
          %s289 = smul.addr %s288, 32
          %s290 = scalar_lea.hbm %s5, %s289
          %s291 = sshll.u32 %s283, 4
          %s292 = int_to_ptr.vmem [resolvable:$true] %s291
          %297 = dma.hbm_to_vmem [thread:$0]  %s290, 128, %s292, %s280, 32, 32, 2
        $region40: #{tpu_custom_call.1} parent=31 // pred_fallthru
          _
      $region32: #{tpu_custom_call.1} parent=5 // pred_fallthru
        _
      %p298 = scmp.le.s32.totalorder 1, %s22
      %p299 = scmp.lt.s32.totalorder %s22, 3
      %p300 = pnand %p298, %p299
      %p301 = pneg %p300
      // Predicated region
      $region41: #{tpu_custom_call.1} parent=5 // pred_check
        _
      $region42: #{tpu_custom_call.1} parent=5 // pred_check_branch
        %303 = sbr.rel (%p300) target = $region44
      $region43: #{tpu_custom_call.1} parent=5 // pred_region
        %s304 = ssub.s32 %s22, 1
        // Predicated region
        $region45: #{tpu_custom_call.1} parent=43 // pred_check
          %p305 = pneg %p55
        $region46: #{tpu_custom_call.1} parent=43 // pred_check_branch
          %307 = sbr.rel (%p305) target = $region48
        $region47: #{tpu_custom_call.1} parent=43 // pred_region
          %308 = dma.done [#allocation5], 128
        $region48: #{tpu_custom_call.1} parent=43 // pred_fallthru
          _
        // Predicated region
        $region49: #{tpu_custom_call.1} parent=43 // pred_check
          %p309 = pneg %p76
        $region50: #{tpu_custom_call.1} parent=43 // pred_check_branch
          %311 = sbr.rel (%p309) target = $region52
        $region51: #{tpu_custom_call.1} parent=43 // pred_region
          %312 = dma.done [#allocation6], 128
        $region52: #{tpu_custom_call.1} parent=43 // pred_fallthru
          _
        // Predicated region
        $region53: #{tpu_custom_call.1} parent=43 // pred_check
          %p313 = pneg %p97
        $region54: #{tpu_custom_call.1} parent=43 // pred_check_branch
          %315 = sbr.rel (%p313) target = $region56
        $region55: #{tpu_custom_call.1} parent=43 // pred_region
          %316 = dma.done [#allocation9], 16
        $region56: #{tpu_custom_call.1} parent=43 // pred_fallthru
          _
        // Predicated region
        $region57: #{tpu_custom_call.1} parent=43 // pred_check
          %p317 = pneg %p118
        $region58: #{tpu_custom_call.1} parent=43 // pred_check_branch
          %319 = sbr.rel (%p317) target = $region60
        $region59: #{tpu_custom_call.1} parent=43 // pred_region
          %320 = dma.done [#allocation3], 2304
        $region60: #{tpu_custom_call.1} parent=43 // pred_fallthru
          _
        %s321 = sand.u32 %s161, 1
        %s322 = scalar_lea.sflag [#allocation12], %s321
        %s323 = sand.u32 %s161, 1
        %s324 = smul.addr %s323, 8
        %s325 = scalar_lea.vmem [#allocation11], %s324
        // Predicated region
        $region61: #{tpu_custom_call.1} parent=43 // pred_check
          %p326 = pneg %p174
        $region62: #{tpu_custom_call.1} parent=43 // pred_check_branch
          %328 = sbr.rel (%p326) target = $region64
        $region63: #{tpu_custom_call.1} parent=43 // pred_region
          %329 = dma.done %s322, 128
        $region64: #{tpu_custom_call.1} parent=43 // pred_fallthru
          _
        %330 = sfence
        %p331 = pneg %p55
        %p332 = pneg %p52
        %p333 = pneg %p76
        %p334 = pneg %p73
        %p335 = pneg %p97
        %p336 = pneg %p94
        %p337 = pneg %p118
        %p338 = pneg %p115
        %p339 = scmp.lt.s32.totalorder %s31, 1
        %s340 = scalar_select %p339, %s31, 1
        %p341 = scmp.lt.s32.totalorder %s32, 0
        %s342 = scalar_select %p341, %s32, 0
        %s343 = smul.addr %s340, 6
        %s344 = sadd.s32 %s342, %s343
        %s345 = smul.addr %s344, 2
        %s346 = scalar_lea.vmem %s4, %s345
        %p347 = pneg %p146
        %p348 = pneg %p143
        %s349 = sand.u32 %s161, 1
        %s350 = scalar_lea.sflag [#allocation12], %s349
        %s351 = sand.u32 %s161, 1
        %s352 = smul.addr %s351, 8
        %s353 = scalar_lea.vmem [#allocation11], %s352
        %p354 = pneg %p174
        %p355 = pneg %p171
        %p356 = pneg %p202
        %p357 = pneg %p199
        %s358 = sand.u32 %s189, 1
        %s359 = scalar_lea.sflag [#allocation4], %s358
        %s360 = sand.u32 %s189, 1
        %s361 = smul.addr %s360, 8
        %s362 = scalar_lea.vmem [#allocation13], %s361
        %p363 = scmp.lt.s32.totalorder %s31, 1
        %s364 = scalar_select %p363, %s31, 1
        %p365 = scmp.lt.s32.totalorder %s32, 0
        %s366 = scalar_select %p365, %s32, 0
        %s367 = smul.addr %s364, 6
        %s368 = sadd.s32 %s366, %s367
        %s369 = smul.addr %s368, 2
        %s370 = scalar_lea.vmem %s4, %s369
        %s371 = sld [smem:[#allocation2]]
        %s372 = sld [smem:[#allocation2 + $0x1]]
        %s373 = sld [smem:[#allocation2 + $0x2]]
        %s374 = sld [smem:[#allocation2 + $0x3]]
        %s375 = sld [smem:[#allocation2 + $0x4]]
        %s376 = sld [smem:[#allocation2 + $0x5]]
        %s377 = sld [smem:[#allocation2 + $0x80]]
        %s378 = sld [smem:[#allocation2 + $0x81]]
        %s379 = sld [smem:[#allocation2 + $0x82]]
        %s380 = sld [smem:[#allocation2 + $0x83]]
        %s381 = sld [smem:[#allocation2 + $0x84]]
        %s382 = sld [smem:[#allocation2 + $0x85]]
        %s383 = sld [smem:[#allocation2 + $0x100]]
        %s384 = sld [smem:[#allocation2 + $0x101]]
        %s385 = sld [smem:[#allocation2 + $0x102]]
        %s386 = sld [smem:[#allocation2 + $0x103]]
        %s387 = sld [smem:[#allocation2 + $0x104]]
        %s388 = sld [smem:[#allocation2 + $0x105]]
        %s389 = sld [smem:[#allocation2 + $0x180]]
        %s390 = sld [smem:[#allocation2 + $0x181]]
        %s391 = sld [smem:[#allocation2 + $0x182]]
        %s392 = sld [smem:[#allocation2 + $0x183]]
        %s393 = sld [smem:[#allocation2 + $0x184]]
        %s394 = sld [smem:[#allocation2 + $0x185]]
        %s395 = sld [smem:[#allocation2 + $0x200]]
        %s396 = sld [smem:[#allocation2 + $0x201]]
        %s397 = sld [smem:[#allocation2 + $0x202]]
        %s398 = sld [smem:[#allocation2 + $0x203]]
        %s399 = sld [smem:[#allocation2 + $0x204]]
        %s400 = sld [smem:[#allocation2 + $0x205]]
        %s401 = sld [smem:[#allocation2 + $0x280]]
        %s402 = sld [smem:[#allocation2 + $0x281]]
        %s403 = sld [smem:[#allocation2 + $0x282]]
        %s404 = sld [smem:[#allocation2 + $0x283]]
        %s405 = sld [smem:[#allocation2 + $0x284]]
        %s406 = sld [smem:[#allocation2 + $0x285]]
        %s407 = sld [smem:[#allocation2 + $0x300]]
        %s408 = sld [smem:[#allocation2 + $0x301]]
        %s409 = sld [smem:[#allocation2 + $0x302]]
        %s410 = sld [smem:[#allocation2 + $0x303]]
        %s411 = sld [smem:[#allocation2 + $0x304]]
        %s412 = sld [smem:[#allocation2 + $0x305]]
        %s413 = sld [smem:[#allocation2 + $0x380]]
        %s414 = sld [smem:[#allocation2 + $0x381]]
        %s415 = sld [smem:[#allocation2 + $0x382]]
        %s416 = sld [smem:[#allocation2 + $0x383]]
        %s417 = sld [smem:[#allocation2 + $0x384]]
        %s418 = sld [smem:[#allocation2 + $0x385]]
        %s419 = sld [smem:[#allocation7]]
        %s420 = sld [smem:[#allocation7 + $0x1]]
        %s421 = sld [smem:[#allocation7 + $0x2]]
        %s422 = sld [smem:[#allocation7 + $0x3]]
        %s423 = sld [smem:[#allocation7 + $0x80]]
        %s424 = sld [smem:[#allocation7 + $0x81]]
        %s425 = sld [smem:[#allocation7 + $0x82]]
        %s426 = sld [smem:[#allocation7 + $0x83]]
        %s427 = sld [smem:[#allocation7 + $0x100]]
        %s428 = sld [smem:[#allocation7 + $0x101]]
        %s429 = sld [smem:[#allocation7 + $0x102]]
        %s430 = sld [smem:[#allocation7 + $0x103]]
        %s431 = sld [smem:[#allocation7 + $0x180]]
        %s432 = sld [smem:[#allocation7 + $0x181]]
        %s433 = sld [smem:[#allocation7 + $0x182]]
        %s434 = sld [smem:[#allocation7 + $0x183]]
        %s435 = sld [smem:[#allocation7 + $0x200]]
        %s436 = sld [smem:[#allocation7 + $0x201]]
        %s437 = sld [smem:[#allocation7 + $0x202]]
        %s438 = sld [smem:[#allocation7 + $0x203]]
        %s439 = sld [smem:[#allocation7 + $0x280]]
        %s440 = sld [smem:[#allocation7 + $0x281]]
        %s441 = sld [smem:[#allocation7 + $0x282]]
        %s442 = sld [smem:[#allocation7 + $0x283]]
        %s443 = sld [smem:[#allocation7 + $0x300]]
        %s444 = sld [smem:[#allocation7 + $0x301]]
        %s445 = sld [smem:[#allocation7 + $0x302]]
        %s446 = sld [smem:[#allocation7 + $0x303]]
        %s447 = sld [smem:[#allocation7 + $0x380]]
        %s448 = sld [smem:[#allocation7 + $0x381]]
        %s449 = sld [smem:[#allocation7 + $0x382]]
        %s450 = sld [smem:[#allocation7 + $0x383]]
        %s451 = sld [smem:[#allocation8]]
        %s452 = sld [smem:[#allocation8 + $0x1]]
        %s453 = sld [smem:[#allocation8 + $0x2]]
        %s454 = sld [smem:[#allocation8 + $0x3]]
        %s455 = sld [smem:[#allocation8 + $0x4]]
        %s456 = sld [smem:[#allocation8 + $0x5]]
        %s457 = sld [smem:[#allocation8 + $0x6]]
        %s458 = sld [smem:[#allocation8 + $0x7]]
        %v459 = vld [vmem:[#allocation10] sm:$0x3]
        %s460 = scalar_lea.vmem [#allocation10], 16
        %v461 = vld [vmem:[%s460] sm:$0x3]
        %s462 = scalar_lea.vmem [#allocation10], 32
        %v463 = vld [vmem:[%s462] sm:$0x3]
        %s464 = scalar_lea.vmem [#allocation10], 48
        %v465 = vld [vmem:[%s464] sm:$0x3]
        %s466 = scalar_lea.vmem [#allocation10], 64
        %v467 = vld [vmem:[%s466] sm:$0x3]
        %s468 = scalar_lea.vmem [#allocation10], 80
        %v469 = vld [vmem:[%s468] sm:$0x3]
        %s470 = scalar_lea.vmem [#allocation10], 96
        %v471 = vld [vmem:[%s470] sm:$0x3]
        %s472 = scalar_lea.vmem [#allocation10], 112
        %v473 = vld [vmem:[%s472] sm:$0x3]
        %v474 = vld [vmem:[%s370] sm:$0x3]
        %v475 = vstv %s371
        %v476 = vmul.f32 %v475, %v474
        %v477 = vadd.f32 %v459, %v476
        %v478 = vstv %s377
        %v479 = vmul.f32 %v478, %v474
        %v480 = vadd.f32 %v461, %v479
        %v481 = vstv %s383
        %v482 = vmul.f32 %v481, %v474
        %v483 = vadd.f32 %v463, %v482
        %v484 = vstv %s389
        %v485 = vmul.f32 %v484, %v474
        %v486 = vadd.f32 %v465, %v485
        %v487 = vstv %s395
        %v488 = vmul.f32 %v487, %v474
        %v489 = vadd.f32 %v467, %v488
        %v490 = vstv %s401
        %v491 = vmul.f32 %v490, %v474
        %v492 = vadd.f32 %v469, %v491
        %v493 = vstv %s407
        %v494 = vmul.f32 %v493, %v474
        %v495 = vadd.f32 %v471, %v494
        %v496 = vstv %s413
        %v497 = vmul.f32 %v496, %v474
        %v498 = vadd.f32 %v473, %v497
        %s499 = scalar_lea.vmem %s370, 2
        %v500 = vld [vmem:[%s499] sm:$0x3]
        %v501 = vstv %s372
        %v502 = vmul.f32 %v501, %v500
        %v503 = vadd.f32 %v477, %v502
        %v504 = vstv %s378
        %v505 = vmul.f32 %v504, %v500
        %v506 = vadd.f32 %v480, %v505
        %v507 = vstv %s384
        %v508 = vmul.f32 %v507, %v500
        %v509 = vadd.f32 %v483, %v508
        %v510 = vstv %s390
        %v511 = vmul.f32 %v510, %v500
        %v512 = vadd.f32 %v486, %v511
        %v513 = vstv %s396
        %v514 = vmul.f32 %v513, %v500
        %v515 = vadd.f32 %v489, %v514
        %v516 = vstv %s402
        %v517 = vmul.f32 %v516, %v500
        %v518 = vadd.f32 %v492, %v517
        %v519 = vstv %s408
        %v520 = vmul.f32 %v519, %v500
        %v521 = vadd.f32 %v495, %v520
        %v522 = vstv %s414
        %v523 = vmul.f32 %v522, %v500
        %v524 = vadd.f32 %v498, %v523
        %s525 = scalar_lea.vmem %s370, 4
        %v526 = vld [vmem:[%s525] sm:$0x3]
        %v527 = vstv %s373
        %v528 = vmul.f32 %v527, %v526
        %v529 = vadd.f32 %v503, %v528
        %v530 = vstv %s379
        %v531 = vmul.f32 %v530, %v526
        %v532 = vadd.f32 %v506, %v531
        %v533 = vstv %s385
        %v534 = vmul.f32 %v533, %v526
        %v535 = vadd.f32 %v509, %v534
        %v536 = vstv %s391
        %v537 = vmul.f32 %v536, %v526
        %v538 = vadd.f32 %v512, %v537
        %v539 = vstv %s397
        %v540 = vmul.f32 %v539, %v526
        %v541 = vadd.f32 %v515, %v540
        %v542 = vstv %s403
        %v543 = vmul.f32 %v542, %v526
        %v544 = vadd.f32 %v518, %v543
        %v545 = vstv %s409
        %v546 = vmul.f32 %v545, %v526
        %v547 = vadd.f32 %v521, %v546
        %v548 = vstv %s415
        %v549 = vmul.f32 %v548, %v526
        %v550 = vadd.f32 %v524, %v549
        %s551 = scalar_lea.vmem %s370, 6
        %v552 = vld [vmem:[%s551] sm:$0x3]
        %v553 = vstv %s374
        %v554 = vmul.f32 %v553, %v552
        %v555 = vadd.f32 %v529, %v554
        %v556 = vstv %s380
        %v557 = vmul.f32 %v556, %v552
        %v558 = vadd.f32 %v532, %v557
        %v559 = vstv %s386
        %v560 = vmul.f32 %v559, %v552
        %v561 = vadd.f32 %v535, %v560
        %v562 = vstv %s392
        %v563 = vmul.f32 %v562, %v552
        %v564 = vadd.f32 %v538, %v563
        %v565 = vstv %s398
        %v566 = vmul.f32 %v565, %v552
        %v567 = vadd.f32 %v541, %v566
        %v568 = vstv %s404
        %v569 = vmul.f32 %v568, %v552
        %v570 = vadd.f32 %v544, %v569
        %v571 = vstv %s410
        %v572 = vmul.f32 %v571, %v552
        %v573 = vadd.f32 %v547, %v572
        %v574 = vstv %s416
        %v575 = vmul.f32 %v574, %v552
        %v576 = vadd.f32 %v550, %v575
        %s577 = scalar_lea.vmem %s370, 8
        %v578 = vld [vmem:[%s577] sm:$0x3]
        %v579 = vstv %s375
        %v580 = vmul.f32 %v579, %v578
        %v581 = vadd.f32 %v555, %v580
        %v582 = vstv %s381
        %v583 = vmul.f32 %v582, %v578
        %v584 = vadd.f32 %v558, %v583
        %v585 = vstv %s387
        %v586 = vmul.f32 %v585, %v578
        %v587 = vadd.f32 %v561, %v586
        %v588 = vstv %s393
        %v589 = vmul.f32 %v588, %v578
        %v590 = vadd.f32 %v564, %v589
        %v591 = vstv %s399
        %v592 = vmul.f32 %v591, %v578
        %v593 = vadd.f32 %v567, %v592
        %v594 = vstv %s405
        %v595 = vmul.f32 %v594, %v578
        %v596 = vadd.f32 %v570, %v595
        %v597 = vstv %s411
        %v598 = vmul.f32 %v597, %v578
        %v599 = vadd.f32 %v573, %v598
        %v600 = vstv %s417
        %v601 = vmul.f32 %v600, %v578
        %v602 = vadd.f32 %v576, %v601
        %s603 = scalar_lea.vmem %s370, 10
        %v604 = vld [vmem:[%s603] sm:$0x3]
        %v605 = vstv %s376
        %v606 = vmul.f32 %v605, %v604
        %v607 = vadd.f32 %v581, %v606
        %v608 = vstv %s382
        %v609 = vmul.f32 %v608, %v604
        %v610 = vadd.f32 %v584, %v609
        %v611 = vstv %s388
        %v612 = vmul.f32 %v611, %v604
        %v613 = vadd.f32 %v587, %v612
        %v614 = vstv %s394
        %v615 = vmul.f32 %v614, %v604
        %v616 = vadd.f32 %v590, %v615
        %v617 = vstv %s400
        %v618 = vmul.f32 %v617, %v604
        %v619 = vadd.f32 %v593, %v618
        %v620 = vstv %s406
        %v621 = vmul.f32 %v620, %v604
        %v622 = vadd.f32 %v596, %v621
        %v623 = vstv %s412
        %v624 = vmul.f32 %v623, %v604
        %v625 = vadd.f32 %v599, %v624
        %v626 = vstv %s418
        %v627 = vmul.f32 %v626, %v604
        %v628 = vadd.f32 %v602, %v627
        %v629 = vld [vmem:[%s325] sm:$0x3]
        %v630 = vstv %s419
        %v631 = vmul.f32 %v630, %v629
        %v632 = vadd.f32 %v607, %v631
        %v633 = vstv %s423
        %v634 = vmul.f32 %v633, %v629
        %v635 = vadd.f32 %v610, %v634
        %v636 = vstv %s427
        %v637 = vmul.f32 %v636, %v629
        %v638 = vadd.f32 %v613, %v637
        %v639 = vstv %s431
        %v640 = vmul.f32 %v639, %v629
        %v641 = vadd.f32 %v616, %v640
        %v642 = vstv %s435
        %v643 = vmul.f32 %v642, %v629
        %v644 = vadd.f32 %v619, %v643
        %v645 = vstv %s439
        %v646 = vmul.f32 %v645, %v629
        %v647 = vadd.f32 %v622, %v646
        %v648 = vstv %s443
        %v649 = vmul.f32 %v648, %v629
        %v650 = vadd.f32 %v625, %v649
        %v651 = vstv %s447
        %v652 = vmul.f32 %v651, %v629
        %v653 = vadd.f32 %v628, %v652
        %s654 = scalar_lea.vmem %s325, 2 [#allocation11]
        %v655 = vld [vmem:[%s654] sm:$0x3]
        %v656 = vstv %s420
        %v657 = vmul.f32 %v656, %v655
        %v658 = vadd.f32 %v632, %v657
        %v659 = vstv %s424
        %v660 = vmul.f32 %v659, %v655
        %v661 = vadd.f32 %v635, %v660
        %v662 = vstv %s428
        %v663 = vmul.f32 %v662, %v655
        %v664 = vadd.f32 %v638, %v663
        %v665 = vstv %s432
        %v666 = vmul.f32 %v665, %v655
        %v667 = vadd.f32 %v641, %v666
        %v668 = vstv %s436
        %v669 = vmul.f32 %v668, %v655
        %v670 = vadd.f32 %v644, %v669
        %v671 = vstv %s440
        %v672 = vmul.f32 %v671, %v655
        %v673 = vadd.f32 %v647, %v672
        %v674 = vstv %s444
        %v675 = vmul.f32 %v674, %v655
        %v676 = vadd.f32 %v650, %v675
        %v677 = vstv %s448
        %v678 = vmul.f32 %v677, %v655
        %v679 = vadd.f32 %v653, %v678
        %s680 = scalar_lea.vmem %s325, 4 [#allocation11]
        %v681 = vld [vmem:[%s680] sm:$0x3]
        %v682 = vstv %s421
        %v683 = vmul.f32 %v682, %v681
        %v684 = vadd.f32 %v658, %v683
        %v685 = vstv %s425
        %v686 = vmul.f32 %v685, %v681
        %v687 = vadd.f32 %v661, %v686
        %v688 = vstv %s429
        %v689 = vmul.f32 %v688, %v681
        %v690 = vadd.f32 %v664, %v689
        %v691 = vstv %s433
        %v692 = vmul.f32 %v691, %v681
        %v693 = vadd.f32 %v667, %v692
        %v694 = vstv %s437
        %v695 = vmul.f32 %v694, %v681
        %v696 = vadd.f32 %v670, %v695
        %v697 = vstv %s441
        %v698 = vmul.f32 %v697, %v681
        %v699 = vadd.f32 %v673, %v698
        %v700 = vstv %s445
        %v701 = vmul.f32 %v700, %v681
        %v702 = vadd.f32 %v676, %v701
        %v703 = vstv %s449
        %v704 = vmul.f32 %v703, %v681
        %v705 = vadd.f32 %v679, %v704
        %s706 = scalar_lea.vmem %s325, 6 [#allocation11]
        %v707 = vld [vmem:[%s706] sm:$0x3]
        %v708 = vstv %s422
        %v709 = vmul.f32 %v708, %v707
        %v710 = vadd.f32 %v684, %v709
        %v711 = vstv %s426
        %v712 = vmul.f32 %v711, %v707
        %v713 = vadd.f32 %v687, %v712
        %v714 = vstv %s430
        %v715 = vmul.f32 %v714, %v707
        %v716 = vadd.f32 %v690, %v715
        %v717 = vstv %s434
        %v718 = vmul.f32 %v717, %v707
        %v719 = vadd.f32 %v693, %v718
        %v720 = vstv %s438
        %v721 = vmul.f32 %v720, %v707
        %v722 = vadd.f32 %v696, %v721
        %v723 = vstv %s442
        %v724 = vmul.f32 %v723, %v707
        %v725 = vadd.f32 %v699, %v724
        %v726 = vstv %s446
        %v727 = vmul.f32 %v726, %v707
        %v728 = vadd.f32 %v702, %v727
        %v729 = vstv %s450
        %v730 = vmul.f32 %v729, %v707
        %v731 = vadd.f32 %v705, %v730
        %s732 = scalar_lea.vmem [#allocation10], 128
        %v733 = vld [vmem:[%s732] sm:$0x3]
        %v734 = vmax.f32 %v710, 0.0
        %v735 = vstv %s451
        %v736 = vmul.f32 %v735, %v734
        %v737 = vadd.f32 %v733, %v736
        %v738 = vmax.f32 %v713, 0.0
        %v739 = vstv %s452
        %v740 = vmul.f32 %v739, %v738
        %v741 = vadd.f32 %v737, %v740
        %v742 = vmax.f32 %v716, 0.0
        %v743 = vstv %s453
        %v744 = vmul.f32 %v743, %v742
        %v745 = vadd.f32 %v741, %v744
        %v746 = vmax.f32 %v719, 0.0
        %v747 = vstv %s454
        %v748 = vmul.f32 %v747, %v746
        %v749 = vadd.f32 %v745, %v748
        %v750 = vmax.f32 %v722, 0.0
        %v751 = vstv %s455
        %v752 = vmul.f32 %v751, %v750
        %v753 = vadd.f32 %v749, %v752
        %v754 = vmax.f32 %v725, 0.0
        %v755 = vstv %s456
        %v756 = vmul.f32 %v755, %v754
        %v757 = vadd.f32 %v753, %v756
        %v758 = vmax.f32 %v728, 0.0
        %v759 = vstv %s457
        %v760 = vmul.f32 %v759, %v758
        %v761 = vadd.f32 %v757, %v760
        %v762 = vmax.f32 %v731, 0.0
        %v763 = vstv %s458
        %v764 = vmul.f32 %v763, %v762
        %v765 = vadd.f32 %v761, %v764
        %v766 = vsub.f32 0.0, %v765
        %v767 = vmul.f32 %v766, 1.442695
        %v768 = vpow.pop %v767
        %v769 = vadd.f32 %v768, 1.0
        %v770 = vrcp.pop %v769
        %v771 = vmul.f32 1.0, %v770
        %v772 = vmul.f32 %v629, %v771
        %773 = vst [vmem:[%s362] sm:$0x3] %v772
        %v774 = vld [vmem:[%s654] sm:$0x3]
        %v775 = vmul.f32 %v774, %v771
        %s776 = scalar_lea.vmem %s362, 2 [#allocation13]
        %777 = vst [vmem:[%s776] sm:$0x3] %v775
        %v778 = vld [vmem:[%s680] sm:$0x3]
        %v779 = vmul.f32 %v778, %v771
        %s780 = scalar_lea.vmem %s362, 4 [#allocation13]
        %781 = vst [vmem:[%s780] sm:$0x3] %v779
        %v782 = vld [vmem:[%s706] sm:$0x3]
        %v783 = vmul.f32 %v782, %v771
        %s784 = scalar_lea.vmem %s362, 6 [#allocation13]
        %785 = vst [vmem:[%s784] sm:$0x3] %v783
        %s786 = sand.u32 %s189, 1
        %s787 = scalar_lea.sflag [#allocation4], %s786
        %s788 = sand.u32 %s189, 1
        %s789 = smul.addr %s788, 8
        %s790 = scalar_lea.vmem [#allocation13], %s789
        // Predicated region
        $region65: #{tpu_custom_call.1} parent=43 // pred_check
          %p791 = pneg %p199
        $region66: #{tpu_custom_call.1} parent=43 // pred_check_branch
          %793 = sbr.rel (%p791) target = $region68
        $region67: #{tpu_custom_call.1} parent=43 // pred_region
          %s795 = ssub.s32 128, 128
          %796 = vsyncadd %s787, %s795
          %s797 = smul.addr %s31, 4
          %s798 = sadd.s32 %s32, %s797
          %s799 = smul.addr %s798, 32
          %s800 = scalar_lea.hbm %s6, %s799
          %s801 = sshll.u32 %s790, 4
          %s802 = int_to_ptr.vmem [resolvable:$true] %s801
          %807 = dma.vmem_to_hbm [thread:$0]  %s802, 128, %s800, %s787, 32, 32, 2
        $region68: #{tpu_custom_call.1} parent=43 // pred_fallthru
          _
      $region44: #{tpu_custom_call.1} parent=5 // pred_fallthru
        _
      %p808 = scmp.le.s32.totalorder 2, %s22
      // Predicated region
      $region69: #{tpu_custom_call.1} parent=5 // pred_check
        %p809 = pneg %p808
      $region70: #{tpu_custom_call.1} parent=5 // pred_check_branch
        %811 = sbr.rel (%p809) target = $region72
      $region71: #{tpu_custom_call.1} parent=5 // pred_region
        %s812 = ssub.s32 %s22, 2
        // Predicated region
        $region73: #{tpu_custom_call.1} parent=71 // pred_check
          %p813 = pneg %p205
        $region74: #{tpu_custom_call.1} parent=71 // pred_check_branch
          %815 = sbr.rel (%p813) target = $region76
        $region75: #{tpu_custom_call.1} parent=71 // pred_region
          %s816 = sand.u32 %s190, 1
          %s817 = scalar_lea.sflag [#allocation4], %s816
          %s818 = sand.u32 %s190, 1
          %s819 = smul.addr %s818, 8
          %s820 = scalar_lea.vmem [#allocation13], %s819
          %821 = dma.done %s817, 128
        $region76: #{tpu_custom_call.1} parent=71 // pred_fallthru
          _
      $region72: #{tpu_custom_call.1} parent=5 // pred_fallthru
        _
    $region6: #{tpu_custom_call.1} parent=1 // loop_footer
      %s26 = sadd.s32 1, %s22
    $region7: #{tpu_custom_call.1} parent=1 // loop_footer_branch
      %21 = sbr.rel target = $region3
    $region8: #{tpu_custom_call.1} parent=1 // loop_exit
      _
    %822 = vsyncpa [#allocation3], 1
    %s823 = scalar_lea.sflag [#allocation3], 1
    %824 = vsyncpa %s823, 1
    %825 = vsyncpa [#allocation12], 1
    %s826 = scalar_lea.sflag [#allocation12], 1
    %827 = vsyncpa %s826, 1
    %828 = vsyncpa [#allocation4], 1
    %s829 = scalar_lea.sflag [#allocation4], 1
    %830 = vsyncpa %s829, 1
    %831 = vsyncpa [#allocation5], 1
    %s832 = scalar_lea.sflag [#allocation5], 1
    %833 = vsyncpa %s832, 1
    %834 = vsyncpa [#allocation6], 1
    %s835 = scalar_lea.sflag [#allocation6], 1
    %836 = vsyncpa %s835, 1
    %837 = vsyncpa [#allocation9], 1

</llo_original>
